<compile_context>
chip_gen: v7x
topology: tpu7x:2x2x1
jax: 0.10.0
libtpu: 0.0.40
codegen_flags: <defaults>
</compile_context>

<pallas_src>
import functools
import math

import jax
import jax.numpy as jnp
from jax import lax
from jax.experimental import pallas as pl
from jax.experimental.pallas import tpu as pltpu


def _mha_kernel(q_ref, k_ref, v_ref,
                wq_ref, bq_ref, wk_ref, bk_ref, wv_ref, bv_ref,
                ctx_ref, *rest,
                n_heads, d_k, d_v, matmul_dtype, return_attn):
    # q_ref  : (1, tq, d_model) block for (batch b, query-tile qi)
    # k_ref  : (1, S,  d_model) block for batch b (full key axis)
    # v_ref  : (1, S,  d_model) block for batch b
    # wq_ref : (d_model, H*d_k) in matmul_dtype, VMEM-resident (constant map)
    # bq_ref : (1, H*d_k) f32 (scale already folded into wq/bq)
    # ctx_ref: (1, tq, H*d_v)  -- final concatenated layout
    # attn_ref (optional): (1, H, tq, S)
    # scratch: k_scr (H, S, d_k), v_scr (H, S, d_v), q_scr (H, tq, d_k)
    if return_attn:
        attn_ref, k_scr, v_scr, q_scr = rest
    else:
        attn_ref = None
        k_scr, v_scr, q_scr = rest

    # --- K/V projections: computed once per batch, cached in VMEM scratch. ---
    @pl.when(pl.program_id(1) == 0)
    def _():
        k = k_ref[0].astype(matmul_dtype)                       # (S, d_model)
        v = v_ref[0].astype(matmul_dtype)                       # (S, d_model)
        # Fused all-head projections: one MXU matmul each, f32 accumulate.
        k_proj = jnp.dot(k, wk_ref[...],
                         preferred_element_type=jnp.float32) + bk_ref[...]
        v_proj = jnp.dot(v, wv_ref[...],
                         preferred_element_type=jnp.float32) + bv_ref[...]
        # Stage per-head (H, S, d) layout once per batch (amortized over qi).
        for h in range(n_heads):
            k_scr[h] = k_proj[:, h * d_k:(h + 1) * d_k].astype(matmul_dtype)
            v_scr[h] = v_proj[:, h * d_v:(h + 1) * d_v].astype(matmul_dtype)

    # --- Q projection for this query tile (1/sqrt(d_k) pre-folded). ---------
    q = q_ref[0].astype(matmul_dtype)                           # (tq, d_model)
    q_proj = jnp.dot(q, wq_ref[...],
                     preferred_element_type=jnp.float32) + bq_ref[...]
    for h in range(n_heads):
        q_scr[h] = q_proj[:, h * d_k:(h + 1) * d_k].astype(matmul_dtype)

    q_h = q_scr[...]                                            # (H, tq, d_k)
    k_h = k_scr[...]                                            # (H, S,  d_k)
    v_h = v_scr[...]                                            # (H, S,  d_v)

    # --- One head-batched QK^T (contract last dims; no explicit transpose). --
    scores = lax.dot_general(
        q_h, k_h,
        dimension_numbers=(((2,), (2,)), ((0,), (0,))),
        preferred_element_type=jnp.float32)                     # (H, tq, S)

    # Softmax over the (full) key axis, all math in f32.
    m = jnp.max(scores, axis=-1, keepdims=True)
    e = jnp.exp(scores - m)
    denom = jnp.sum(e, axis=-1, keepdims=True)
    attn = e * pl.reciprocal(denom, approx=False)               # (H, tq, S)

    if return_attn:
        attn_ref[0] = attn.astype(attn_ref.dtype)

    # --- One head-batched attn @ V. ------------------------------------------
    ctx = lax.dot_general(
        attn.astype(matmul_dtype), v_h,
        dimension_numbers=(((2,), (1,)), ((0,), (0,))),
        preferred_element_type=jnp.float32)                     # (H, tq, d_v)

    # Single lane-dense store of the concatenated (tq, H*d_v) context tile.
    ctx_ref[0] = jnp.concatenate(
        [ctx[h] for h in range(n_heads)], axis=-1).astype(ctx_ref.dtype)


def _vmem_bytes_estimate(S, d_model, n_heads, d_k, d_v, block_q,
                         matmul_dtype, return_attn, attn_dtype):
    in_b = 4                                   # f32 activations
    mm_b = jnp.dtype(matmul_dtype).itemsize
    at_b = jnp.dtype(attn_dtype).itemsize
    est = 0
    est += 2 * block_q * d_model * in_b        # q block (double-buffered)
    est += 2 * 2 * S * d_model * in_b          # k, v blocks
    est += 2 * d_model * n_heads * (2 * d_k + d_v) * mm_b   # resident weights
    est += 2 * block_q * n_heads * d_v * 4     # ctx out block
    if return_attn:
        est += 2 * n_heads * block_q * S * at_b             # attn out block
    est += n_heads * S * (d_k + d_v) * mm_b    # K/V scratch
    est += n_heads * block_q * d_k * mm_b      # Q scratch
    est += 4 << 20                             # slack
    return est


def multi_head_attention(q, k, v, params, *, n_heads, d_k, d_v,
                         block_q=128, matmul_dtype=jnp.bfloat16,
                         return_attn=True, attn_dtype=jnp.float32,
                         vmem_limit_bytes=None):
    """Pallas forward of _MultiHeadAttention (attn_mask=None, no dropout).

    q, k, v: (B, S, d_model) float32
    params : PyTorch nn.Linear convention:
        'wq','wk': (n_heads*d_k, d_model), 'wv': (n_heads*d_v, d_model)
        'bq','bk': (n_heads*d_k,),         'bv': (n_heads*d_v,)
    Returns (context (B, S, n_heads*d_v), attn (B, n_heads, S, S) or None).
    """
    B, S, d_model = q.shape
    block_q = min(block_q, S)
    assert S % block_q == 0, "block_q must divide S"
    if block_q < S:
        assert block_q % 8 == 0, "query tile must be a multiple of 8 sublanes"
    num_q = S // block_q

    scale = 1.0 / math.sqrt(d_k)

    # Fuse heads + fold the softmax scale into the Q projection; cast the
    # VMEM-resident weights to matmul_dtype in the wrapper (no per-step cast).
    wq_f = (jnp.transpose(params["wq"]) * scale).astype(matmul_dtype)
    wk_f = jnp.transpose(params["wk"]).astype(matmul_dtype)
    wv_f = jnp.transpose(params["wv"]).astype(matmul_dtype)
    bq_f = (params["bq"] * scale).reshape(1, n_heads * d_k).astype(jnp.float32)
    bk_f = params["bk"].reshape(1, n_heads * d_k).astype(jnp.float32)
    bv_f = params["bv"].reshape(1, n_heads * d_v).astype(jnp.float32)

    kernel = functools.partial(_mha_kernel, n_heads=n_heads, d_k=d_k, d_v=d_v,
                               matmul_dtype=matmul_dtype,
                               return_attn=return_attn)

    grid = (B, num_q)

    q_spec = pl.BlockSpec((1, block_q, d_model), lambda b, qi: (b, qi, 0))
    kv_spec = pl.BlockSpec((1, S, d_model), lambda b, qi: (b, 0, 0))
    # Constant index_map -> weights/biases stay VMEM-resident across the grid.
    w_spec = lambda n: pl.BlockSpec((d_model, n), lambda b, qi: (0, 0))
    b_spec = lambda n: pl.BlockSpec((1, n), lambda b, qi: (0, 0))

    ctx_spec = pl.BlockSpec((1, block_q, n_heads * d_v), lambda b, qi: (b, qi, 0))
    ctx_shape = jax.ShapeDtypeStruct((B, S, n_heads * d_v), jnp.float32)

    if return_attn:
        out_shape = (ctx_shape,
                     jax.ShapeDtypeStruct((B, n_heads, S, S), attn_dtype))
        out_specs = [ctx_spec,
                     pl.BlockSpec((1, n_heads, block_q, S),
                                  lambda b, qi: (b, 0, qi, 0))]
    else:
        out_shape = ctx_shape
        out_specs = ctx_spec

    scratch_shapes = [
        pltpu.VMEM((n_heads, S, d_k), matmul_dtype),       # k_scr
        pltpu.VMEM((n_heads, S, d_v), matmul_dtype),       # v_scr
        pltpu.VMEM((n_heads, block_q, d_k), matmul_dtype), # q_scr
    ]

    if vmem_limit_bytes is None:
        est = _vmem_bytes_estimate(S, d_model, n_heads, d_k, d_v, block_q,
                                   matmul_dtype, return_attn, attn_dtype)
        vmem_limit_bytes = est if est > (32 << 20) else None

    out = pl.pallas_call(
        kernel,
        out_shape=out_shape,
        grid_spec=pltpu.PrefetchScalarGridSpec(
            num_scalar_prefetch=0,
            grid=grid,
            in_specs=[
                q_spec, kv_spec, kv_spec,
                w_spec(n_heads * d_k), b_spec(n_heads * d_k),
                w_spec(n_heads * d_k), b_spec(n_heads * d_k),
                w_spec(n_heads * d_v), b_spec(n_heads * d_v),
            ],
            out_specs=out_specs,
            scratch_shapes=scratch_shapes,
        ),
        compiler_params=pltpu.CompilerParams(
            # qi must be "arbitrary": K/V scratch is filled at qi == 0 and
            # reused by later qi steps of the same batch.
            dimension_semantics=("parallel", "arbitrary"),
            vmem_limit_bytes=vmem_limit_bytes),
    )(q, k, v, wq_f, bq_f, wk_f, bk_f, wv_f, bv_f)

    if return_attn:
        ctx, attn = out
        return ctx, attn
    return out, None


def _reference(q, k, v, params, *, n_heads, d_k, d_v):
    B, S, d_model = q.shape

    def lin(x, w, b):
        return jnp.einsum("bsd,od->bso", x, w) + b

    q_s = lin(q, params["wq"], params["bq"]).reshape(B, S, n_heads, d_k).transpose(0, 2, 1, 3)
    k_s = lin(k, params["wk"], params["bk"]).reshape(B, S, n_heads, d_k).transpose(0, 2, 1, 3)
    v_s = lin(v, params["wv"], params["bv"]).reshape(B, S, n_heads, d_v).transpose(0, 2, 1, 3)
    scores = jnp.einsum("bhqd,bhkd->bhqk", q_s, k_s) / math.sqrt(d_k)
    attn = jax.nn.softmax(scores, axis=-1)
    ctx = jnp.einsum("bhqk,bhkd->bhqd", attn, v_s)
    ctx = ctx.transpose(0, 2, 1, 3).reshape(B, S, n_heads * d_v)
    return ctx, attn


if __name__ == "__main__":
    # Module hyper-parameters (small, consistent with _MultiHeadAttention).
    d_model, d_k, d_v, n_heads = 32, 16, 16, 4
    B, S = 2, 8

    key = jax.random.PRNGKey(0)
    keys = jax.random.split(key, 9)

    bound = 1.0 / math.sqrt(d_model)
    params = {
        "wq": jax.random.uniform(keys[0], (d_k * n_heads, d_model), jnp.float32, -bound, bound),
        "bq": jax.random.uniform(keys[1], (d_k * n_heads,), jnp.float32, -bound, bound),
        "wk": jax.random.uniform(keys[2], (d_k * n_heads, d_model), jnp.float32, -bound, bound),
        "bk": jax.random.uniform(keys[3], (d_k * n_heads,), jnp.float32, -bound, bound),
        "wv": jax.random.uniform(keys[4], (d_v * n_heads, d_model), jnp.float32, -bound, bound),
        "bv": jax.random.uniform(keys[5], (d_v * n_heads,), jnp.float32, -bound, bound),
    }

    q = jax.random.normal(keys[6], (B, S, d_model), jnp.float32)
    k = jax.random.normal(keys[7], (B, S, d_model), jnp.float32)
    v = jax.random.normal(keys[8], (B, S, d_model), jnp.float32)

    ctx_ref, attn_ref = _reference(q, k, v, params,
                                   n_heads=n_heads, d_k=d_k, d_v=d_v)

    # 1) f32 MXU operands + f32 attn output: exact-parity path.
    context, attn = multi_head_attention(
        q, k, v, params, n_heads=n_heads, d_k=d_k, d_v=d_v,
        matmul_dtype=jnp.float32, return_attn=True, attn_dtype=jnp.float32)
    jax.block_until_ready((context, attn))
    assert context.shape == (B, S, n_heads * d_v)
    assert attn.shape == (B, n_heads, S, S)
    assert jnp.allclose(context, ctx_ref, atol=1e-5, rtol=1e-5)
    assert jnp.allclose(attn, attn_ref, atol=1e-5, rtol=1e-5)

    # 2) Default fast path: bf16 MXU operands, bf16 attn output writeback.
    ctx_bf16, attn_bf16 = multi_head_attention(
        q, k, v, params, n_heads=n_heads, d_k=d_k, d_v=d_v,
        attn_dtype=jnp.bfloat16)
    jax.block_until_ready((ctx_bf16, attn_bf16))
    assert jnp.allclose(ctx_bf16, ctx_ref, atol=5e-2, rtol=5e-2)
    assert jnp.allclose(attn_bf16.astype(jnp.float32), attn_ref, atol=5e-2, rtol=5e-2)

    # 3) Context-only path: attention-matrix HBM writeback skipped entirely.
    ctx_only, no_attn = multi_head_attention(
        q, k, v, params, n_heads=n_heads, d_k=d_k, d_v=d_v,
        return_attn=False)
    jax.block_until_ready(ctx_only)
    assert no_attn is None
    assert jnp.allclose(ctx_only, ctx_ref, atol=5e-2, rtol=5e-2)

    print("KERNEL_OK")
</pallas_src>

<mosaic_0001>
module attributes {stable_mosaic.version = 11 : i64} {
  func.func @_mha_kernel(%arg0: i32, %arg1: i32, %arg2: memref<1x8x32xf32, #tpu.memory_space<vmem>>, %arg3: memref<1x8x32xf32, #tpu.memory_space<vmem>>, %arg4: memref<1x8x32xf32, #tpu.memory_space<vmem>>, %arg5: memref<32x64xf32, #tpu.memory_space<vmem>>, %arg6: memref<1x64xf32, #tpu.memory_space<vmem>>, %arg7: memref<32x64xf32, #tpu.memory_space<vmem>>, %arg8: memref<1x64xf32, #tpu.memory_space<vmem>>, %arg9: memref<32x64xf32, #tpu.memory_space<vmem>>, %arg10: memref<1x64xf32, #tpu.memory_space<vmem>>, %arg11: memref<1x8x64xf32, #tpu.memory_space<vmem>>, %arg12: memref<1x4x8x8xf32, #tpu.memory_space<vmem>>, %arg13: memref<4x8x16xf32, #tpu.memory_space<vmem>>, %arg14: memref<4x8x16xf32, #tpu.memory_space<vmem>>, %arg15: memref<4x8x16xf32, #tpu.memory_space<vmem>>) attributes {dimension_semantics = [#tpu.dimension_semantics<parallel>, #tpu.dimension_semantics<arbitrary>], iteration_bounds = array<i64: 2, 1>, scalar_prefetch = 0 : i64, scratch_operands = 3 : i64, tpu.core_type = #tpu.core_type<tc>, window_params = [{transform_indices = @transform_0, window_bounds = array<i64: 1, 8, 32>}, {transform_indices = @transform_1, window_bounds = array<i64: 1, 8, 32>}, {transform_indices = @transform_2, window_bounds = array<i64: 1, 8, 32>}, {pipeline_mode = #tpu.pipeline_mode<synchronous>, transform_indices = @transform_3, window_bounds = array<i64: 32, 64>}, {pipeline_mode = #tpu.pipeline_mode<synchronous>, transform_indices = @transform_4, window_bounds = array<i64: 1, 64>}, {pipeline_mode = #tpu.pipeline_mode<synchronous>, transform_indices = @transform_5, window_bounds = array<i64: 32, 64>}, {pipeline_mode = #tpu.pipeline_mode<synchronous>, transform_indices = @transform_6, window_bounds = array<i64: 1, 64>}, {pipeline_mode = #tpu.pipeline_mode<synchronous>, transform_indices = @transform_7, window_bounds = array<i64: 32, 64>}, {pipeline_mode = #tpu.pipeline_mode<synchronous>, transform_indices = @transform_8, window_bounds = array<i64: 1, 64>}, {transform_indices = @transform_9, window_bounds = array<i64: 1, 8, 64>}, {transform_indices = @transform_10, window_bounds = array<i64: 1, 4, 8, 8>}]} {
    %c0_i32 = arith.constant 0 : i32
    %0 = arith.cmpi eq, %arg1, %c0_i32 : i32
    %1 = arith.extui %0 : i1 to i32
    %c0_i32_0 = arith.constant 0 : i32
    %2 = arith.cmpi ne, %1, %c0_i32_0 : i32
    scf.if %2 {
      %c0_36 = arith.constant 0 : index
      %c0_37 = arith.constant 0 : index
      %c0_38 = arith.constant 0 : index
      %56 = vector.load %arg3[%c0_36, %c0_37, %c0_38] : memref<1x8x32xf32, #tpu.memory_space<vmem>>, vector<1x8x32xf32>
      %57 = vector.shape_cast %56 : vector<1x8x32xf32> to vector<8x32xf32>
      %c0_39 = arith.constant 0 : index
      %c0_40 = arith.constant 0 : index
      %c0_41 = arith.constant 0 : index
      %58 = vector.load %arg4[%c0_39, %c0_40, %c0_41] : memref<1x8x32xf32, #tpu.memory_space<vmem>>, vector<1x8x32xf32>
      %59 = vector.shape_cast %58 : vector<1x8x32xf32> to vector<8x32xf32>
      %c0_42 = arith.constant 0 : index
      %c0_43 = arith.constant 0 : index
      %60 = vector.load %arg7[%c0_42, %c0_43] : memref<32x64xf32, #tpu.memory_space<vmem>>, vector<32x64xf32>
      %cst_44 = arith.constant dense<0.000000e+00> : vector<8x64xf32>
      %61 = tpu.matmul %57, %60, %cst_44 {dimension_numbers = #tpu.dot_dimension_numbers<[1], [0], [0], [1], [0, 0, 1, 1], [], []>} : vector<8x32xf32>, vector<32x64xf32>, vector<8x64xf32> -> vector<8x64xf32>
      %c0_45 = arith.constant 0 : index
      %c0_46 = arith.constant 0 : index
      %62 = vector.load %arg8[%c0_45, %c0_46] : memref<1x64xf32, #tpu.memory_space<vmem>>, vector<1x64xf32>
      %63 = vector.broadcast %62 : vector<1x64xf32> to vector<8x64xf32>
      %64 = arith.addf %61, %63 : vector<8x64xf32>
      %c0_47 = arith.constant 0 : index
      %c0_48 = arith.constant 0 : index
      %65 = vector.load %arg9[%c0_47, %c0_48] : memref<32x64xf32, #tpu.memory_space<vmem>>, vector<32x64xf32>
      %cst_49 = arith.constant dense<0.000000e+00> : vector<8x64xf32>
      %66 = tpu.matmul %59, %65, %cst_49 {dimension_numbers = #tpu.dot_dimension_numbers<[1], [0], [0], [1], [0, 0, 1, 1], [], []>} : vector<8x32xf32>, vector<32x64xf32>, vector<8x64xf32> -> vector<8x64xf32>
      %c0_50 = arith.constant 0 : index
      %c0_51 = arith.constant 0 : index
      %67 = vector.load %arg10[%c0_50, %c0_51] : memref<1x64xf32, #tpu.memory_space<vmem>>, vector<1x64xf32>
      %68 = vector.broadcast %67 : vector<1x64xf32> to vector<8x64xf32>
      %69 = arith.addf %66, %68 : vector<8x64xf32>
      %70 = vector.extract_strided_slice %64 {offsets = [0, 0], sizes = [8, 16], strides = [1, 1]} : vector<8x64xf32> to vector<8x16xf32>
      %c0_52 = arith.constant 0 : index
      %c0_53 = arith.constant 0 : index
      %c0_54 = arith.constant 0 : index
      %71 = vector.load %arg13[%c0_52, %c0_53, %c0_54] : memref<4x8x16xf32, #tpu.memory_space<vmem>>, vector<1x8x16xf32>
      %72 = vector.shape_cast %71 : vector<1x8x16xf32> to vector<8x16xf32>
      %73 = vector.shape_cast %70 : vector<8x16xf32> to vector<1x8x16xf32>
      tpu.vector_store %arg13[%c0_52, %c0_53, %c0_54], %73 {strides = array<i32>} : memref<4x8x16xf32, #tpu.memory_space<vmem>>, vector<1x8x16xf32>,
      %74 = vector.extract_strided_slice %69 {offsets = [0, 0], sizes = [8, 16], strides = [1, 1]} : vector<8x64xf32> to vector<8x16xf32>
      %c0_55 = arith.constant 0 : index
      %c0_56 = arith.constant 0 : index
      %c0_57 = arith.constant 0 : index
      %75 = vector.load %arg14[%c0_55, %c0_56, %c0_57] : memref<4x8x16xf32, #tpu.memory_space<vmem>>, vector<1x8x16xf32>
      %76 = vector.shape_cast %75 : vector<1x8x16xf32> to vector<8x16xf32>
      %77 = vector.shape_cast %74 : vector<8x16xf32> to vector<1x8x16xf32>
      tpu.vector_store %arg14[%c0_55, %c0_56, %c0_57], %77 {strides = array<i32>} : memref<4x8x16xf32, #tpu.memory_space<vmem>>, vector<1x8x16xf32>,
      %78 = vector.extract_strided_slice %64 {offsets = [0, 16], sizes = [8, 16], strides = [1, 1]} : vector<8x64xf32> to vector<8x16xf32>
      %c1_58 = arith.constant 1 : index
      %c0_59 = arith.constant 0 : index
      %c0_60 = arith.constant 0 : index
      %79 = vector.load %arg13[%c1_58, %c0_59, %c0_60] : memref<4x8x16xf32, #tpu.memory_space<vmem>>, vector<1x8x16xf32>
      %80 = vector.shape_cast %79 : vector<1x8x16xf32> to vector<8x16xf32>
      %81 = vector.shape_cast %78 : vector<8x16xf32> to vector<1x8x16xf32>
      tpu.vector_store %arg13[%c1_58, %c0_59, %c0_60], %81 {strides = array<i32>} : memref<4x8x16xf32, #tpu.memory_space<vmem>>, vector<1x8x16xf32>,
      %82 = vector.extract_strided_slice %69 {offsets = [0, 16], sizes = [8, 16], strides = [1, 1]} : vector<8x64xf32> to vector<8x16xf32>
      %c1_61 = arith.constant 1 : index
      %c0_62 = arith.constant 0 : index
      %c0_63 = arith.constant 0 : index
      %83 = vector.load %arg14[%c1_61, %c0_62, %c0_63] : memref<4x8x16xf32, #tpu.memory_space<vmem>>, vector<1x8x16xf32>
      %84 = vector.shape_cast %83 : vector<1x8x16xf32> to vector<8x16xf32>
      %85 = vector.shape_cast %82 : vector<8x16xf32> to vector<1x8x16xf32>
      tpu.vector_store %arg14[%c1_61, %c0_62, %c0_63], %85 {strides = array<i32>} : memref<4x8x16xf32, #tpu.memory_space<vmem>>, vector<1x8x16xf32>,
      %86 = vector.extract_strided_slice %64 {offsets = [0, 32], sizes = [8, 16], strides = [1, 1]} : vector<8x64xf32> to vector<8x16xf32>
      %c2_64 = arith.constant 2 : index
      %c0_65 = arith.constant 0 : index
      %c0_66 = arith.constant 0 : index
      %87 = vector.load %arg13[%c2_64, %c0_65, %c0_66] : memref<4x8x16xf32, #tpu.memory_space<vmem>>, vector<1x8x16xf32>
      %88 = vector.shape_cast %87 : vector<1x8x16xf32> to vector<8x16xf32>
      %89 = vector.shape_cast %86 : vector<8x16xf32> to vector<1x8x16xf32>
      tpu.vector_store %arg13[%c2_64, %c0_65, %c0_66], %89 {strides = array<i32>} : memref<4x8x16xf32, #tpu.memory_space<vmem>>, vector<1x8x16xf32>,
      %90 = vector.extract_strided_slice %69 {offsets = [0, 32], sizes = [8, 16], strides = [1, 1]} : vector<8x64xf32> to vector<8x16xf32>
      %c2_67 = arith.constant 2 : index
      %c0_68 = arith.constant 0 : index
      %c0_69 = arith.constant 0 : index
      %91 = vector.load %arg14[%c2_67, %c0_68, %c0_69] : memref<4x8x16xf32, #tpu.memory_space<vmem>>, vector<1x8x16xf32>
      %92 = vector.shape_cast %91 : vector<1x8x16xf32> to vector<8x16xf32>
      %93 = vector.shape_cast %90 : vector<8x16xf32> to vector<1x8x16xf32>
      tpu.vector_store %arg14[%c2_67, %c0_68, %c0_69], %93 {strides = array<i32>} : memref<4x8x16xf32, #tpu.memory_space<vmem>>, vector<1x8x16xf32>,
      %94 = vector.extract_strided_slice %64 {offsets = [0, 48], sizes = [8, 16], strides = [1, 1]} : vector<8x64xf32> to vector<8x16xf32>
      %c3_70 = arith.constant 3 : index
      %c0_71 = arith.constant 0 : index
      %c0_72 = arith.constant 0 : index
      %95 = vector.load %arg13[%c3_70, %c0_71, %c0_72] : memref<4x8x16xf32, #tpu.memory_space<vmem>>, vector<1x8x16xf32>
      %96 = vector.shape_cast %95 : vector<1x8x16xf32> to vector<8x16xf32>
      %97 = vector.shape_cast %94 : vector<8x16xf32> to vector<1x8x16xf32>
      tpu.vector_store %arg13[%c3_70, %c0_71, %c0_72], %97 {strides = array<i32>} : memref<4x8x16xf32, #tpu.memory_space<vmem>>, vector<1x8x16xf32>,
      %98 = vector.extract_strided_slice %69 {offsets = [0, 48], sizes = [8, 16], strides = [1, 1]} : vector<8x64xf32> to vector<8x16xf32>
      %c3_73 = arith.constant 3 : index
      %c0_74 = arith.constant 0 : index
      %c0_75 = arith.constant 0 : index
      %99 = vector.load %arg14[%c3_73, %c0_74, %c0_75] : memref<4x8x16xf32, #tpu.memory_space<vmem>>, vector<1x8x16xf32>
      %100 = vector.shape_cast %99 : vector<1x8x16xf32> to vector<8x16xf32>
      %101 = vector.shape_cast %98 : vector<8x16xf32> to vector<1x8x16xf32>
      tpu.vector_store %arg14[%c3_73, %c0_74, %c0_75], %101 {strides = array<i32>} : memref<4x8x16xf32, #tpu.memory_space<vmem>>, vector<1x8x16xf32>,
    } else {
    }
    %c0 = arith.constant 0 : index
    %c0_1 = arith.constant 0 : index
    %c0_2 = arith.constant 0 : index
    %3 = vector.load %arg2[%c0, %c0_1, %c0_2] : memref<1x8x32xf32, #tpu.memory_space<vmem>>, vector<1x8x32xf32>
    %4 = vector.shape_cast %3 : vector<1x8x32xf32> to vector<8x32xf32>
    %c0_3 = arith.constant 0 : index
    %c0_4 = arith.constant 0 : index
    %5 = vector.load %arg5[%c0_3, %c0_4] : memref<32x64xf32, #tpu.memory_space<vmem>>, vector<32x64xf32>
    %cst = arith.constant dense<0.000000e+00> : vector<8x64xf32>
    %6 = tpu.matmul %4, %5, %cst {dimension_numbers = #tpu.dot_dimension_numbers<[1], [0], [0], [1], [0, 0, 1, 1], [], []>} : vector<8x32xf32>, vector<32x64xf32>, vector<8x64xf32> -> vector<8x64xf32>
    %c0_5 = arith.constant 0 : index
    %c0_6 = arith.constant 0 : index
    %7 = vector.load %arg6[%c0_5, %c0_6] : memref<1x64xf32, #tpu.memory_space<vmem>>, vector<1x64xf32>
    %8 = vector.broadcast %7 : vector<1x64xf32> to vector<8x64xf32>
    %9 = arith.addf %6, %8 : vector<8x64xf32>
    %10 = vector.extract_strided_slice %9 {offsets = [0, 0], sizes = [8, 16], strides = [1, 1]} : vector<8x64xf32> to vector<8x16xf32>
    %c0_7 = arith.constant 0 : index
    %c0_8 = arith.constant 0 : index
    %c0_9 = arith.constant 0 : index
    %11 = vector.load %arg15[%c0_7, %c0_8, %c0_9] : memref<4x8x16xf32, #tpu.memory_space<vmem>>, vector<1x8x16xf32>
    %12 = vector.shape_cast %11 : vector<1x8x16xf32> to vector<8x16xf32>
    %13 = vector.shape_cast %10 : vector<8x16xf32> to vector<1x8x16xf32>
    tpu.vector_store %arg15[%c0_7, %c0_8, %c0_9], %13 {strides = array<i32>} : memref<4x8x16xf32, #tpu.memory_space<vmem>>, vector<1x8x16xf32>,
    %14 = vector.extract_strided_slice %9 {offsets = [0, 16], sizes = [8, 16], strides = [1, 1]} : vector<8x64xf32> to vector<8x16xf32>
    %c1 = arith.constant 1 : index
    %c0_10 = arith.constant 0 : index
    %c0_11 = arith.constant 0 : index
    %15 = vector.load %arg15[%c1, %c0_10, %c0_11] : memref<4x8x16xf32, #tpu.memory_space<vmem>>, vector<1x8x16xf32>
    %16 = vector.shape_cast %15 : vector<1x8x16xf32> to vector<8x16xf32>
    %17 = vector.shape_cast %14 : vector<8x16xf32> to vector<1x8x16xf32>
    tpu.vector_store %arg15[%c1, %c0_10, %c0_11], %17 {strides = array<i32>} : memref<4x8x16xf32, #tpu.memory_space<vmem>>, vector<1x8x16xf32>,
    %18 = vector.extract_strided_slice %9 {offsets = [0, 32], sizes = [8, 16], strides = [1, 1]} : vector<8x64xf32> to vector<8x16xf32>
    %c2 = arith.constant 2 : index
    %c0_12 = arith.constant 0 : index
    %c0_13 = arith.constant 0 : index
    %19 = vector.load %arg15[%c2, %c0_12, %c0_13] : memref<4x8x16xf32, #tpu.memory_space<vmem>>, vector<1x8x16xf32>
    %20 = vector.shape_cast %19 : vector<1x8x16xf32> to vector<8x16xf32>
    %21 = vector.shape_cast %18 : vector<8x16xf32> to vector<1x8x16xf32>
    tpu.vector_store %arg15[%c2, %c0_12, %c0_13], %21 {strides = array<i32>} : memref<4x8x16xf32, #tpu.memory_space<vmem>>, vector<1x8x16xf32>,
    %22 = vector.extract_strided_slice %9 {offsets = [0, 48], sizes = [8, 16], strides = [1, 1]} : vector<8x64xf32> to vector<8x16xf32>
    %c3 = arith.constant 3 : index
    %c0_14 = arith.constant 0 : index
    %c0_15 = arith.constant 0 : index
    %23 = vector.load %arg15[%c3, %c0_14, %c0_15] : memref<4x8x16xf32, #tpu.memory_space<vmem>>, vector<1x8x16xf32>
    %24 = vector.shape_cast %23 : vector<1x8x16xf32> to vector<8x16xf32>
    %25 = vector.shape_cast %22 : vector<8x16xf32> to vector<1x8x16xf32>
    tpu.vector_store %arg15[%c3, %c0_14, %c0_15], %25 {strides = array<i32>} : memref<4x8x16xf32, #tpu.memory_space<vmem>>, vector<1x8x16xf32>,
    %c0_16 = arith.constant 0 : index
    %c0_17 = arith.constant 0 : index
    %c0_18 = arith.constant 0 : index
    %26 = vector.load %arg15[%c0_16, %c0_17, %c0_18] : memref<4x8x16xf32, #tpu.memory_space<vmem>>, vector<4x8x16xf32>
    %c0_19 = arith.constant 0 : index
    %c0_20 = arith.constant 0 : index
    %c0_21 = arith.constant 0 : index
    %27 = vector.load %arg13[%c0_19, %c0_20, %c0_21] : memref<4x8x16xf32, #tpu.memory_space<vmem>>, vector<4x8x16xf32>
    %c0_22 = arith.constant 0 : index
    %c0_23 = arith.constant 0 : index
    %c0_24 = arith.constant 0 : index
    %28 = vector.load %arg14[%c0_22, %c0_23, %c0_24] : memref<4x8x16xf32, #tpu.memory_space<vmem>>, vector<4x8x16xf32>
    %cst_25 = arith.constant dense<0.000000e+00> : vector<4x8x8xf32>
    %29 = tpu.matmul %26, %27, %cst_25 {dimension_numbers = #tpu.dot_dimension_numbers<[2], [2], [1], [1], [0, 0, 0, 1, 1, 1], [0], [0]>} : vector<4x8x16xf32>, vector<4x8x16xf32>, vector<4x8x8xf32> -> vector<4x8x8xf32>
    %cst_26 = arith.constant dense<0xFF800000> : vector<4x8xf32>
    %30 = vector.multi_reduction <maximumf>, %29, %cst_26 [2] : vector<4x8x8xf32> to vector<4x8xf32>
    %31 = vector.shape_cast %30 : vector<4x8xf32> to vector<4x8x1xf32>
    %32 = vector.broadcast %31 : vector<4x8x1xf32> to vector<4x8x8xf32>
    %33 = arith.subf %29, %32 : vector<4x8x8xf32>
    %34 = math.exp %33 : vector<4x8x8xf32>
    %cst_27 = arith.constant dense<0.000000e+00> : vector<4x8xf32>
    %35 = vector.multi_reduction <add>, %34, %cst_27 [2] : vector<4x8x8xf32> to vector<4x8xf32>
    %36 = vector.shape_cast %35 : vector<4x8xf32> to vector<4x8x1xf32>
    %37 = tpu.reciprocal %36 : vector<4x8x1xf32> -> vector<4x8x1xf32>
    %38 = vector.broadcast %37 : vector<4x8x1xf32> to vector<4x8x8xf32>
    %39 = arith.mulf %34, %38 : vector<4x8x8xf32>
    %c0_28 = arith.constant 0 : index
    %c0_29 = arith.constant 0 : index
    %c0_30 = arith.constant 0 : index
    %c0_31 = arith.constant 0 : index
    %40 = vector.load %arg12[%c0_28, %c0_29, %c0_30, %c0_31] : memref<1x4x8x8xf32, #tpu.memory_space<vmem>>, vector<1x4x8x8xf32>
    %41 = vector.shape_cast %40 : vector<1x4x8x8xf32> to vector<4x8x8xf32>
    %42 = vector.shape_cast %39 : vector<4x8x8xf32> to vector<1x4x8x8xf32>
    tpu.vector_store %arg12[%c0_28, %c0_29, %c0_30, %c0_31], %42 {strides = array<i32>} : memref<1x4x8x8xf32, #tpu.memory_space<vmem>>, vector<1x4x8x8xf32>,
    %cst_32 = arith.constant dense<0.000000e+00> : vector<4x8x16xf32>
    %43 = tpu.matmul %39, %28, %cst_32 {dimension_numbers = #tpu.dot_dimension_numbers<[2], [1], [1], [2], [0, 0, 0, 1, 1, 2], [0], [0]>} : vector<4x8x8xf32>, vector<4x8x16xf32>, vector<4x8x16xf32> -> vector<4x8x16xf32>
    %44 = vector.extract_strided_slice %43 {offsets = [0, 0, 0], sizes = [1, 8, 16], strides = [1, 1, 1]} : vector<4x8x16xf32> to vector<1x8x16xf32>
    %45 = vector.shape_cast %44 : vector<1x8x16xf32> to vector<8x16xf32>
    %46 = vector.extract_strided_slice %43 {offsets = [1, 0, 0], sizes = [1, 8, 16], strides = [1, 1, 1]} : vector<4x8x16xf32> to vector<1x8x16xf32>
    %47 = vector.shape_cast %46 : vector<1x8x16xf32> to vector<8x16xf32>
    %48 = vector.extract_strided_slice %43 {offsets = [2, 0, 0], sizes = [1, 8, 16], strides = [1, 1, 1]} : vector<4x8x16xf32> to vector<1x8x16xf32>
    %49 = vector.shape_cast %48 : vector<1x8x16xf32> to vector<8x16xf32>
    %50 = vector.extract_strided_slice %43 {offsets = [3, 0, 0], sizes = [1, 8, 16], strides = [1, 1, 1]} : vector<4x8x16xf32> to vector<1x8x16xf32>
    %51 = vector.shape_cast %50 : vector<1x8x16xf32> to vector<8x16xf32>
    %52 = tpu.concatenate %45, %47, %49, %51 in 1 : vector<8x16xf32>, vector<8x16xf32>, vector<8x16xf32>, vector<8x16xf32> -> vector<8x64xf32>
    %c0_33 = arith.constant 0 : index
    %c0_34 = arith.constant 0 : index
    %c0_35 = arith.constant 0 : index
    %53 = vector.load %arg11[%c0_33, %c0_34, %c0_35] : memref<1x8x64xf32, #tpu.memory_space<vmem>>, vector<1x8x64xf32>
    %54 = vector.shape_cast %53 : vector<1x8x64xf32> to vector<8x64xf32>
    %55 = vector.shape_cast %52 : vector<8x64xf32> to vector<1x8x64xf32>
    tpu.vector_store %arg11[%c0_33, %c0_34, %c0_35], %55 {strides = array<i32>} : memref<1x8x64xf32, #tpu.memory_space<vmem>>, vector<1x8x64xf32>,
    return
  }
  func.func @transform_0(%arg0: i32, %arg1: i32) -> (i32, i32, i32) {
    %c0_i32 = arith.constant 0 : i32
    %c0_i32_0 = arith.constant 0 : i32
    return %arg0, %arg1, %c0_i32 : i32, i32, i32
  }
  func.func @transform_1(%arg0: i32, %arg1: i32) -> (i32, i32, i32) {
    %c0_i32 = arith.constant 0 : i32
    %c0_i32_0 = arith.constant 0 : i32
    %c0_i32_1 = arith.constant 0 : i32
    return %arg0, %c0_i32, %c0_i32_0 : i32, i32, i32
  }
  func.func @transform_2(%arg0: i32, %arg1: i32) -> (i32, i32, i32) {
    %c0_i32 = arith.constant 0 : i32
    %c0_i32_0 = arith.constant 0 : i32
    %c0_i32_1 = arith.constant 0 : i32
    return %arg0, %c0_i32, %c0_i32_0 : i32, i32, i32
  }
  func.func @transform_3(%arg0: i32, %arg1: i32) -> (i32, i32) {
    %c0_i32 = arith.constant 0 : i32
    %c0_i32_0 = arith.constant 0 : i32
    %c0_i32_1 = arith.constant 0 : i32
    return %c0_i32, %c0_i32_0 : i32, i32
  }
  func.func @transform_4(%arg0: i32, %arg1: i32) -> (i32, i32) {
    %c0_i32 = arith.constant 0 : i32
    %c0_i32_0 = arith.constant 0 : i32
    %c0_i32_1 = arith.constant 0 : i32
    return %c0_i32, %c0_i32_0 : i32, i32
  }
  func.func @transform_5(%arg0: i32, %arg1: i32) -> (i32, i32) {
    %c0_i32 = arith.constant 0 : i32
    %c0_i32_0 = arith.constant 0 : i32
    %c0_i32_1 = arith.constant 0 : i32
    return %c0_i32, %c0_i32_0 : i32, i32
  }
  func.func @transform_6(%arg0: i32, %arg1: i32) -> (i32, i32) {
    %c0_i32 = arith.constant 0 : i32
    %c0_i32_0 = arith.constant 0 : i32
    %c0_i32_1 = arith.constant 0 : i32
    return %c0_i32, %c0_i32_0 : i32, i32
  }
  func.func @transform_7(%arg0: i32, %arg1: i32) -> (i32, i32) {
    %c0_i32 = arith.constant 0 : i32
    %c0_i32_0 = arith.constant 0 : i32
    %c0_i32_1 = arith.constant 0 : i32
    return %c0_i32, %c0_i32_0 : i32, i32
  }
  func.func @transform_8(%arg0: i32, %arg1: i32) -> (i32, i32) {
    %c0_i32 = arith.constant 0 : i32
    %c0_i32_0 = arith.constant 0 : i32
    %c0_i32_1 = arith.constant 0 : i32
    return %c0_i32, %c0_i32_0 : i32, i32
  }
  func.func @transform_9(%arg0: i32, %arg1: i32) -> (i32, i32, i32) {
    %c0_i32 = arith.constant 0 : i32
    %c0_i32_0 = arith.constant 0 : i32
    return %arg0, %arg1, %c0_i32 : i32, i32, i32
  }
  func.func @transform_10(%arg0: i32, %arg1: i32) -> (i32, i32, i32, i32) {
    %c0_i32 = arith.constant 0 : i32
    %c0_i32_0 = arith.constant 0 : i32
    %c0_i32_1 = arith.constant 0 : i32
    return %arg0, %c0_i32, %arg1, %c0_i32_0 : i32, i32, i32, i32
  }
}

</mosaic_0001>

<llo_original>
// kernel: tpu_custom_call.1
$region0: #{tpu_custom_call.1}
  #allocation0 [shape = 'u32[]', space=smem, size = 0x4, offset = 0x4, fixed_abs, tag = 'smem constant byte address 0x4 - core index']
  #allocation1 [shape = 'u32[144,128]{1,0:T(1,128)}', space=vmem, size = 0x12000, scoped, tag = 'internal scratch']
  #allocation2 [shape = 'f32[4,8,16]{2,1,0:T(8,128)}', space=vmem, size = 0x4000, scoped, tag = 'scratch operand']
  #allocation3 [shape = 'f32[4,8,16]{2,1,0:T(8,128)}', space=vmem, size = 0x4000, scoped, tag = 'scratch operand']
  #allocation4 [shape = 'f32[4,8,16]{2,1,0:T(8,128)}', space=vmem, size = 0x4000, scoped, tag = 'scratch operand']
  %s0 = inlined_call_operand.hbm [shape: f32[2,8,32], index: 0, kind: input, shape index: {}]
  %s1 = inlined_call_operand.hbm [shape: f32[2,8,32], index: 1, kind: input, shape index: {}]
  %s2 = inlined_call_operand.hbm [shape: f32[2,8,32], index: 2, kind: input, shape index: {}]
  %s3 = inlined_call_operand.hbm [shape: f32[32,64], index: 3, kind: input, shape index: {}]
  %s4 = inlined_call_operand.vmem [shape: f32[1,64], index: 4, kind: input, shape index: {}]
  %s5 = inlined_call_operand.hbm [shape: f32[32,64], index: 5, kind: input, shape index: {}]
  %s6 = inlined_call_operand.vmem [shape: f32[1,64], index: 6, kind: input, shape index: {}]
  %s7 = inlined_call_operand.hbm [shape: f32[32,64], index: 7, kind: input, shape index: {}]
  %s8 = inlined_call_operand.vmem [shape: f32[1,64], index: 8, kind: input, shape index: {}]
  %s9 = inlined_call_operand.hbm [shape: f32[2,8,64], index: 9, kind: output, shape index: {0}]
  %s10 = inlined_call_operand.hbm [shape: f32[2,4,8,8], index: 10, kind: output, shape index: {1}]
  %11 = xla_tuple %s9, %s10
  %s12 = sld [smem:[#allocation0]]
  $region105: #{tpu_custom_call.1} parent=0
    _
  %s14 = ssub.s32 1, %s12
  %s15 = scalar_select 0, %s14, %s12
  $region1: #{tpu_custom_call.1} parent=0
    #allocation5 [shape = 'u8[8192]{0}', space=vmem, size = 0x2000, scoped, tag = 'input window, operand 0']
    #allocation6 [shape = 's32[2]{0}', space=sflag, size = 0x8, scoped, tag = 'scoped memory for tpu_custom_call.1']
    #allocation7 [shape = 's32[2]{0}', space=sflag, size = 0x8, scoped, tag = 'scoped memory for tpu_custom_call.1']
    #allocation8 [shape = 'u8[8192]{0}', space=vmem, size = 0x2000, scoped, tag = 'input window, operand 1']
    #allocation9 [shape = 's32[2]{0}', space=sflag, size = 0x8, scoped, tag = 'scoped memory for tpu_custom_call.1']
    #allocation10 [shape = 'u8[8192]{0}', space=vmem, size = 0x2000, scoped, tag = 'input window, operand 2']
    #allocation11 [shape = 'u8[16384]{0}', space=vmem, size = 0x4000, scoped, tag = 'input window, operand 3, single buffered']
    #allocation12 [shape = 's32[1]{0}', space=sflag, size = 0x4, scoped, tag = 'scoped memory for tpu_custom_call.1']
    #allocation13 [shape = 'u8[16384]{0}', space=vmem, size = 0x4000, scoped, tag = 'input window, operand 5, single buffered']
    #allocation14 [shape = 'u8[16384]{0}', space=vmem, size = 0x4000, scoped, tag = 'input window, operand 7, single buffered']
    #allocation15 [shape = 's32[1]{0}', space=sflag, size = 0x4, scoped, tag = 'scoped memory for tpu_custom_call.1']
    #allocation16 [shape = 'u8[8192]{0}', space=vmem, size = 0x2000, scoped, tag = 'output window, operand 0']
    #allocation17 [shape = 'u8[32768]{0}', space=vmem, size = 0x8000, scoped, tag = 'output window, operand 1']
    #allocation18 [shape = 's32[2]{0}', space=sflag, size = 0x8, scoped, tag = 'scoped memory for tpu_custom_call.1']
    %16 = vsyncpa [#allocation6], 0
    %s17 = scalar_lea.sflag [#allocation6], 1
    %18 = vsyncpa %s17, 0
    %19 = vsyncpa [#allocation9], 0
    %s20 = scalar_lea.sflag [#allocation9], 1
    %21 = vsyncpa %s20, 0
    %22 = vsyncpa [#allocation12], 0
    %23 = vsyncpa [#allocation15], 0
    %24 = vsyncpa [#allocation7], 0
    %s25 = scalar_lea.sflag [#allocation7], 1
    %26 = vsyncpa %s25, 0
    %27 = vsyncpa [#allocation18], 0
    %s28 = scalar_lea.sflag [#allocation18], 1
    %29 = vsyncpa %s28, 0
    loop: start=0, step=1, limit=4
    $region2: #{tpu_custom_call.1} parent=1 // loop_pre_header
      _
    $region3: #{tpu_custom_call.1} parent=1 // loop_header
      %s31 = sphi 0, %s35
      %p32 = scmp.ge.s32.totalorder %s31, 4
      %s38 = sphi 0, %s50
      %s39 = sphi 0, %s46
      %s40 = sphi 0, %s38
      %s41 = sphi 0, %s39
      %s42 = sphi 0, %s40
      %s43 = sphi 0, %s41
      %s55 = sphi 0, %s57
      %s58 = sphi 0, %s55
      %s59 = sphi 0, %s58
      %s75 = sphi 0, %s59
      %s81 = sphi 0, %s83
      %s84 = sphi 0, %s81
      %s85 = sphi 0, %s84
      %s101 = sphi 0, %s85
      %s107 = sphi 0, %s109
      %s110 = sphi 0, %s107
      %s111 = sphi 0, %s110
      %s127 = sphi 0, %s111
      %s131 = sphi 0, %s131
      %s133 = sphi 0, %s131
      %s134 = sphi 0, %s133
      %s148 = sphi 0, %s134
      %s152 = sphi 0, %s152
      %s154 = sphi 0, %s152
      %s155 = sphi 0, %s154
      %s169 = sphi 0, %s155
      %s173 = sphi 0, %s173
      %s175 = sphi 0, %s173
      %s176 = sphi 0, %s175
      %s190 = sphi 0, %s176
      %s194 = sphi 0, %s194
      %s196 = sphi 0, %s194
      %s197 = sphi 0, %s196
      %s211 = sphi 0, %s197
      %s215 = sphi 0, %s215
      %s217 = sphi 0, %s215
      %s218 = sphi 0, %s217
      %s232 = sphi 0, %s218
      %s236 = sphi 0, %s236
      %s238 = sphi 0, %s236
      %s239 = sphi 0, %s238
      %s253 = sphi 0, %s239
      %s261 = sphi 0, %s263
      %s264 = sphi 0, %s261
      %s265 = sphi 0, %s264
      %s281 = sphi 0, %s265
      %s289 = sphi 0, %s291
      %s292 = sphi 0, %s289
      %s293 = sphi 0, %s292
      %s309 = sphi 0, %s293
    $region4: #{tpu_custom_call.1} parent=1 // loop_header_branch
      %34 = sbr.rel (%p32) target = $region8
    $region5: #{tpu_custom_call.1} parent=1 // loop_body
      %s36 = ssub.s32 %s31, 1
      %s37 = ssub.s32 %s31, 2
      %s44 = sadd.s32 1, %s39
      %p45 = scmp.ge.s32.totalorder %s44, 1
      %s46 = scalar_select %p45, 0, %s44
      %s47 = sadd.s32 1, %s38
      %s48 = scalar_select %p45, %s47, %s38
      %p49 = scmp.ge.s32.totalorder %s48, 2
      %s50 = scalar_select %p49, 0, %s48
      %s51 = ssub.s32 %s38, %s50
      %s52 = ssub.s32 %s39, %s46
      %s53 = sor.u32 %s51, %s52
      %p54 = scmp.eq.s32.totalorder %s53, 0
      %s56 = sadd.s32 %s55, 1
      %s57 = scalar_select %p54, %s55, %s56
      %p60 = pneg %p54
      %p61 = scmp.eq.s32.totalorder %s31, 1
      %p62 = por %p60, %p61
      %p63 = scmp.ne.s32.totalorder %s55, %s58
      %p64 = scmp.eq.s32.totalorder %s31, 0
      %p65 = por %p63, %p64
      %p66 = scmp.ne.s32.totalorder %s55, %s58
      %p67 = scmp.eq.s32.totalorder %s36, 1
      %p68 = por %p66, %p67
      %p69 = scmp.ne.s32.totalorder %s58, %s59
      %p70 = scmp.eq.s32.totalorder %s36, 0
      %p71 = por %p69, %p70
      %p72 = scmp.ne.s32.totalorder %s58, %s59
      %p73 = scmp.eq.s32.totalorder %s37, 1
      %p74 = por %p72, %p73
      %p76 = scmp.ne.s32.totalorder %s59, %s75
      %p77 = scmp.eq.s32.totalorder %s37, 0
      %p78 = por %p76, %p77
      %s79 = ssub.s32 %s38, %s50
      %p80 = scmp.eq.s32.totalorder %s79, 0
      %s82 = sadd.s32 %s81, 1
      %s83 = scalar_select %p80, %s81, %s82
      %p86 = pneg %p80
      %p87 = scmp.eq.s32.totalorder %s31, 1
      %p88 = por %p86, %p87
      %p89 = scmp.ne.s32.totalorder %s81, %s84
      %p90 = scmp.eq.s32.totalorder %s31, 0
      %p91 = por %p89, %p90
      %p92 = scmp.ne.s32.totalorder %s81, %s84
      %p93 = scmp.eq.s32.totalorder %s36, 1
      %p94 = por %p92, %p93
      %p95 = scmp.ne.s32.totalorder %s84, %s85
      %p96 = scmp.eq.s32.totalorder %s36, 0
      %p97 = por %p95, %p96
      %p98 = scmp.ne.s32.totalorder %s84, %s85
      %p99 = scmp.eq.s32.totalorder %s37, 1
      %p100 = por %p98, %p99
      %p102 = scmp.ne.s32.totalorder %s85, %s101
      %p103 = scmp.eq.s32.totalorder %s37, 0
      %p104 = por %p102, %p103
      %s105 = ssub.s32 %s38, %s50
      %p106 = scmp.eq.s32.totalorder %s105, 0
      %s108 = sadd.s32 %s107, 1
      %s109 = scalar_select %p106, %s107, %s108
      %p112 = pneg %p106
      %p113 = scmp.eq.s32.totalorder %s31, 1
      %p114 = por %p112, %p113
      %p115 = scmp.ne.s32.totalorder %s107, %s110
      %p116 = scmp.eq.s32.totalorder %s31, 0
      %p117 = por %p115, %p116
      %p118 = scmp.ne.s32.totalorder %s107, %s110
      %p119 = scmp.eq.s32.totalorder %s36, 1
      %p120 = por %p118, %p119
      %p121 = scmp.ne.s32.totalorder %s110, %s111
      %p122 = scmp.eq.s32.totalorder %s36, 0
      %p123 = por %p121, %p122
      %p124 = scmp.ne.s32.totalorder %s110, %s111
      %p125 = scmp.eq.s32.totalorder %s37, 1
      %p126 = por %p124, %p125
      %p128 = scmp.ne.s32.totalorder %s111, %s127
      %p129 = scmp.eq.s32.totalorder %s37, 0
      %p130 = por %p128, %p129
      %s132 = sadd.s32 %s131, 1
      %p135 = scmp.eq.s32.totalorder %s31, 1
      %p136 = scmp.ne.s32.totalorder %s131, %s133
      %p137 = scmp.eq.s32.totalorder %s31, 0
      %p138 = por %p136, %p137
      %p139 = scmp.ne.s32.totalorder %s131, %s133
      %p140 = scmp.eq.s32.totalorder %s36, 1
      %p141 = por %p139, %p140
      %p142 = scmp.ne.s32.totalorder %s133, %s134
      %p143 = scmp.eq.s32.totalorder %s36, 0
      %p144 = por %p142, %p143
      %p145 = scmp.ne.s32.totalorder %s133, %s134
      %p146 = scmp.eq.s32.totalorder %s37, 1
      %p147 = por %p145, %p146
      %p149 = scmp.ne.s32.totalorder %s134, %s148
      %p150 = scmp.eq.s32.totalorder %s37, 0
      %p151 = por %p149, %p150
      %s153 = sadd.s32 %s152, 1
      %p156 = scmp.eq.s32.totalorder %s31, 1
      %p157 = scmp.ne.s32.totalorder %s152, %s154
      %p158 = scmp.eq.s32.totalorder %s31, 0
      %p159 = por %p157, %p158
      %p160 = scmp.ne.s32.totalorder %s152, %s154
      %p161 = scmp.eq.s32.totalorder %s36, 1
      %p162 = por %p160, %p161
      %p163 = scmp.ne.s32.totalorder %s154, %s155
      %p164 = scmp.eq.s32.totalorder %s36, 0
      %p165 = por %p163, %p164
      %p166 = scmp.ne.s32.totalorder %s154, %s155
      %p167 = scmp.eq.s32.totalorder %s37, 1
      %p168 = por %p166, %p167
      %p170 = scmp.ne.s32.totalorder %s155, %s169
      %p171 = scmp.eq.s32.totalorder %s37, 0
      %p172 = por %p170, %p171
      %s174 = sadd.s32 %s173, 1
      %p177 = scmp.eq.s32.totalorder %s31, 1
      %p178 = scmp.ne.s32.totalorder %s173, %s175
      %p179 = scmp.eq.s32.totalorder %s31, 0
      %p180 = por %p178, %p179
      %p181 = scmp.ne.s32.totalorder %s173, %s175
      %p182 = scmp.eq.s32.totalorder %s36, 1
      %p183 = por %p181, %p182
      %p184 = scmp.ne.s32.totalorder %s175, %s176
      %p185 = scmp.eq.s32.totalorder %s36, 0
      %p186 = por %p184, %p185
      %p187 = scmp.ne.s32.totalorder %s175, %s176
      %p188 = scmp.eq.s32.totalorder %s37, 1
      %p189 = por %p187, %p188
      %p191 = scmp.ne.s32.totalorder %s176, %s190
      %p192 = scmp.eq.s32.totalorder %s37, 0
      %p193 = por %p191, %p192
      %s195 = sadd.s32 %s194, 1
      %p198 = scmp.eq.s32.totalorder %s31, 1
      %p199 = scmp.ne.s32.totalorder %s194, %s196
      %p200 = scmp.eq.s32.totalorder %s31, 0
      %p201 = por %p199, %p200
      %p202 = scmp.ne.s32.totalorder %s194, %s196
      %p203 = scmp.eq.s32.totalorder %s36, 1
      %p204 = por %p202, %p203
      %p205 = scmp.ne.s32.totalorder %s196, %s197
      %p206 = scmp.eq.s32.totalorder %s36, 0
      %p207 = por %p205, %p206
      %p208 = scmp.ne.s32.totalorder %s196, %s197
      %p209 = scmp.eq.s32.totalorder %s37, 1
      %p210 = por %p208, %p209
      %p212 = scmp.ne.s32.totalorder %s197, %s211
      %p213 = scmp.eq.s32.totalorder %s37, 0
      %p214 = por %p212, %p213
      %s216 = sadd.s32 %s215, 1
      %p219 = scmp.eq.s32.totalorder %s31, 1
      %p220 = scmp.ne.s32.totalorder %s215, %s217
      %p221 = scmp.eq.s32.totalorder %s31, 0
      %p222 = por %p220, %p221
      %p223 = scmp.ne.s32.totalorder %s215, %s217
      %p224 = scmp.eq.s32.totalorder %s36, 1
      %p225 = por %p223, %p224
      %p226 = scmp.ne.s32.totalorder %s217, %s218
      %p227 = scmp.eq.s32.totalorder %s36, 0
      %p228 = por %p226, %p227
      %p229 = scmp.ne.s32.totalorder %s217, %s218
      %p230 = scmp.eq.s32.totalorder %s37, 1
      %p231 = por %p229, %p230
      %p233 = scmp.ne.s32.totalorder %s218, %s232
      %p234 = scmp.eq.s32.totalorder %s37, 0
      %p235 = por %p233, %p234
      %s237 = sadd.s32 %s236, 1
      %p240 = scmp.eq.s32.totalorder %s31, 1
      %p241 = scmp.ne.s32.totalorder %s236, %s238
      %p242 = scmp.eq.s32.totalorder %s31, 0
      %p243 = por %p241, %p242
      %p244 = scmp.ne.s32.totalorder %s236, %s238
      %p245 = scmp.eq.s32.totalorder %s36, 1
      %p246 = por %p244, %p245
      %p247 = scmp.ne.s32.totalorder %s238, %s239
      %p248 = scmp.eq.s32.totalorder %s36, 0
      %p249 = por %p247, %p248
      %p250 = scmp.ne.s32.totalorder %s238, %s239
      %p251 = scmp.eq.s32.totalorder %s37, 1
      %p252 = por %p250, %p251
      %p254 = scmp.ne.s32.totalorder %s239, %s253
      %p255 = scmp.eq.s32.totalorder %s37, 0
      %p256 = por %p254, %p255
      %s257 = ssub.s32 %s38, %s50
      %s258 = ssub.s32 %s39, %s46
      %s259 = sor.u32 %s257, %s258
      %p260 = scmp.eq.s32.totalorder %s259, 0
      %s262 = sadd.s32 %s261, 1
      %s263 = scalar_select %p260, %s261, %s262
      %p266 = pneg %p260
      %p267 = scmp.eq.s32.totalorder %s31, 1
      %p268 = por %p266, %p267
      %p269 = scmp.ne.s32.totalorder %s261, %s264
      %p270 = scmp.eq.s32.totalorder %s31, 0
      %p271 = por %p269, %p270
      %p272 = scmp.ne.s32.totalorder %s261, %s264
      %p273 = scmp.eq.s32.totalorder %s36, 1
      %p274 = por %p272, %p273
      %p275 = scmp.ne.s32.totalorder %s264, %s265
      %p276 = scmp.eq.s32.totalorder %s36, 0
      %p277 = por %p275, %p276
      %p278 = scmp.ne.s32.totalorder %s264, %s265
      %p279 = scmp.eq.s32.totalorder %s37, 1
      %p280 = por %p278, %p279
      %p282 = scmp.ne.s32.totalorder %s265, %s281
      %p283 = scmp.eq.s32.totalorder %s37, 0
      %p284 = por %p282, %p283
      %s285 = ssub.s32 %s38, %s50
      %s286 = ssub.s32 %s39, %s46
      %s287 = sor.u32 %s285, %s286
      %p288 = scmp.eq.s32.totalorder %s287, 0
      %s290 = sadd.s32 %s289, 1
      %s291 = scalar_select %p288, %s289, %s290
      %p294 = pneg %p288
      %p295 = scmp.eq.s32.totalorder %s31, 1
      %p296 = por %p294, %p295
      %p297 = scmp.ne.s32.totalorder %s289, %s292
      %p298 = scmp.eq.s32.totalorder %s31, 0
      %p299 = por %p297, %p298
      %p300 = scmp.ne.s32.totalorder %s289, %s292
      %p301 = scmp.eq.s32.totalorder %s36, 1
      %p302 = por %p300, %p301
      %p303 = scmp.ne.s32.totalorder %s292, %s293
      %p304 = scmp.eq.s32.totalorder %s36, 0
      %p305 = por %p303, %p304
      %p306 = scmp.ne.s32.totalorder %s292, %s293
      %p307 = scmp.eq.s32.totalorder %s37, 1
      %p308 = por %p306, %p307
      %p310 = scmp.ne.s32.totalorder %s293, %s309
      %p311 = scmp.eq.s32.totalorder %s37, 0
      %p312 = por %p310, %p311
      %p313 = scmp.le.s32.totalorder 1, %s31
      %p314 = scmp.lt.s32.totalorder %s31, 3
      %p315 = pnand %p313, %p314
      %p316 = pneg %p315
      // Predicated region
      $region9: #{tpu_custom_call.1} parent=5 // pred_check
        _
      $region10: #{tpu_custom_call.1} parent=5 // pred_check_branch
        %318 = sbr.rel (%p315) target = $region12
      $region11: #{tpu_custom_call.1} parent=5 // pred_region
        %s319 = ssub.s32 %s31, 1
        // Predicated region
        $region13: #{tpu_custom_call.1} parent=11 // pred_check
          %p320 = pneg %p144
        $region14: #{tpu_custom_call.1} parent=11 // pred_check_branch
          %322 = sbr.rel (%p320) target = $region16
        $region15: #{tpu_custom_call.1} parent=11 // pred_region
          %s324 = ssub.s32 512, 512
          %325 = vsyncadd [#allocation12], %s324
          %s326 = sshll.u32 [#allocation11], 4
          %s327 = int_to_ptr.vmem [resolvable:$true] %s326
          %332 = dma.hbm_to_vmem [thread:$0]  %s3, 512, %s327, [#allocation12], 128, 128, 8
        $region16: #{tpu_custom_call.1} parent=11 // pred_fallthru
          _
        // Predicated region
        $region17: #{tpu_custom_call.1} parent=11 // pred_check
          %p333 = pneg %p165
        $region18: #{tpu_custom_call.1} parent=11 // pred_check_branch
          %335 = sbr.rel (%p333) target = $region20
        $region19: #{tpu_custom_call.1} parent=11 // pred_region
          _
        $region20: #{tpu_custom_call.1} parent=11 // pred_fallthru
          _
        // Predicated region
        $region21: #{tpu_custom_call.1} parent=11 // pred_check
          %p336 = pneg %p186
        $region22: #{tpu_custom_call.1} parent=11 // pred_check_branch
          %338 = sbr.rel (%p336) target = $region24
        $region23: #{tpu_custom_call.1} parent=11 // pred_region
          %s340 = ssub.s32 512, 512
          %341 = vsyncadd [#allocation12], %s340
          %s342 = sshll.u32 [#allocation13], 4
          %s343 = int_to_ptr.vmem [resolvable:$true] %s342
          %348 = dma.hbm_to_vmem [thread:$0]  %s5, 512, %s343, [#allocation12], 128, 128, 8
        $region24: #{tpu_custom_call.1} parent=11 // pred_fallthru
          _
        // Predicated region
        $region25: #{tpu_custom_call.1} parent=11 // pred_check
          %p349 = pneg %p207
        $region26: #{tpu_custom_call.1} parent=11 // pred_check_branch
          %351 = sbr.rel (%p349) target = $region28
        $region27: #{tpu_custom_call.1} parent=11 // pred_region
          _
        $region28: #{tpu_custom_call.1} parent=11 // pred_fallthru
          _
        // Predicated region
        $region29: #{tpu_custom_call.1} parent=11 // pred_check
          %p352 = pneg %p228
        $region30: #{tpu_custom_call.1} parent=11 // pred_check_branch
          %354 = sbr.rel (%p352) target = $region32
        $region31: #{tpu_custom_call.1} parent=11 // pred_region
          %s356 = ssub.s32 512, 512
          %357 = vsyncadd [#allocation15], %s356
          %s358 = sshll.u32 [#allocation14], 4
          %s359 = int_to_ptr.vmem [resolvable:$true] %s358
          %364 = dma.hbm_to_vmem [thread:$0]  %s7, 512, %s359, [#allocation15], 128, 128, 8
        $region32: #{tpu_custom_call.1} parent=11 // pred_fallthru
          _
        // Predicated region
        $region33: #{tpu_custom_call.1} parent=11 // pred_check
          %p365 = pneg %p249
        $region34: #{tpu_custom_call.1} parent=11 // pred_check_branch
          %367 = sbr.rel (%p365) target = $region36
        $region35: #{tpu_custom_call.1} parent=11 // pred_region
          _
        $region36: #{tpu_custom_call.1} parent=11 // pred_fallthru
          _
      $region12: #{tpu_custom_call.1} parent=5 // pred_fallthru
        _
      %p368 = scmp.lt.s32.totalorder %s31, 2
      // Predicated region
      $region37: #{tpu_custom_call.1} parent=5 // pred_check
        %p369 = pneg %p368
      $region38: #{tpu_custom_call.1} parent=5 // pred_check_branch
        %371 = sbr.rel (%p369) target = $region40
      $region39: #{tpu_custom_call.1} parent=5 // pred_region
        // Predicated region
        $region41: #{tpu_custom_call.1} parent=39 // pred_check
          %p372 = pneg %p65
        $region42: #{tpu_custom_call.1} parent=39 // pred_check_branch
          %374 = sbr.rel (%p372) target = $region44
        $region43: #{tpu_custom_call.1} parent=39 // pred_region
          %s375 = sand.u32 %s55, 1
          %s376 = scalar_lea.sflag [#allocation6], %s375
          %s377 = sand.u32 %s55, 1
          %s378 = smul.addr %s377, 8
          %s379 = scalar_lea.vmem [#allocation5], %s378
          %s381 = ssub.s32 128, 128
          %382 = vsyncadd %s376, %s381
          %s383 = sadd.s32 %s39, %s38
          %s384 = smul.addr %s383, 128
          %s385 = scalar_lea.hbm %s0, %s384
          %s387 = sshll.u32 %s379, 4
          %s388 = int_to_ptr.vmem [resolvable:$true] %s387
          %390 = dma.hbm_to_vmem [thread:$0]  %s385, 128, %s388, %s376
        $region44: #{tpu_custom_call.1} parent=39 // pred_fallthru
          _
        // Predicated region
        $region45: #{tpu_custom_call.1} parent=39 // pred_check
          %p391 = pneg %p91
        $region46: #{tpu_custom_call.1} parent=39 // pred_check_branch
          %393 = sbr.rel (%p391) target = $region48
        $region47: #{tpu_custom_call.1} parent=39 // pred_region
          %s394 = sand.u32 %s31, 1
          %s395 = scalar_lea.sflag [#allocation9], %s394
          %s396 = sand.u32 %s81, 1
          %s397 = smul.addr %s396, 8
          %s398 = scalar_lea.vmem [#allocation8], %s397
          %s400 = ssub.s32 128, 128
          %401 = vsyncadd %s395, %s400
          %s402 = smul.addr %s38, 128
          %s403 = scalar_lea.hbm %s1, %s402
          %s405 = sshll.u32 %s398, 4
          %s406 = int_to_ptr.vmem [resolvable:$true] %s405
          %408 = dma.hbm_to_vmem [thread:$0]  %s403, 128, %s406, %s395
        $region48: #{tpu_custom_call.1} parent=39 // pred_fallthru
          _
        // Predicated region
        $region49: #{tpu_custom_call.1} parent=39 // pred_check
          %p409 = pneg %p117
        $region50: #{tpu_custom_call.1} parent=39 // pred_check_branch
          %411 = sbr.rel (%p409) target = $region52
        $region51: #{tpu_custom_call.1} parent=39 // pred_region
          %s412 = sand.u32 %s31, 1
          %s413 = scalar_lea.sflag [#allocation9], %s412
          %s414 = sand.u32 %s107, 1
          %s415 = smul.addr %s414, 8
          %s416 = scalar_lea.vmem [#allocation10], %s415
          %s418 = ssub.s32 128, 128
          %419 = vsyncadd %s413, %s418
          %s420 = smul.addr %s38, 128
          %s421 = scalar_lea.hbm %s2, %s420
          %s423 = sshll.u32 %s416, 4
          %s424 = int_to_ptr.vmem [resolvable:$true] %s423
          %426 = dma.hbm_to_vmem [thread:$0]  %s421, 128, %s424, %s413
        $region52: #{tpu_custom_call.1} parent=39 // pred_fallthru
          _
      $region40: #{tpu_custom_call.1} parent=5 // pred_fallthru
        _
      %p427 = scmp.le.s32.totalorder 1, %s31
      %p428 = scmp.lt.s32.totalorder %s31, 3
      %p429 = pnand %p427, %p428
      %p430 = pneg %p429
      // Predicated region
      $region53: #{tpu_custom_call.1} parent=5 // pred_check
        _
      $region54: #{tpu_custom_call.1} parent=5 // pred_check_branch
        %432 = sbr.rel (%p429) target = $region56
      $region55: #{tpu_custom_call.1} parent=5 // pred_region
        %s433 = ssub.s32 %s31, 1
        %s434 = sand.u32 %s58, 1
        %s435 = scalar_lea.sflag [#allocation6], %s434
        %s436 = sand.u32 %s58, 1
        %s437 = smul.addr %s436, 8
        %s438 = scalar_lea.vmem [#allocation5], %s437
        // Predicated region
        $region57: #{tpu_custom_call.1} parent=55 // pred_check
          %p439 = pneg %p71
        $region58: #{tpu_custom_call.1} parent=55 // pred_check_branch
          %441 = sbr.rel (%p439) target = $region60
        $region59: #{tpu_custom_call.1} parent=55 // pred_region
          %442 = dma.done %s435, 128
        $region60: #{tpu_custom_call.1} parent=55 // pred_fallthru
          _
        %s443 = sand.u32 %s36, 1
        %s444 = scalar_lea.sflag [#allocation9], %s443
        %s445 = sand.u32 %s84, 1
        %s446 = smul.addr %s445, 8
        %s447 = scalar_lea.vmem [#allocation8], %s446
        // Predicated region
        $region61: #{tpu_custom_call.1} parent=55 // pred_check
          %p448 = pneg %p97
        $region62: #{tpu_custom_call.1} parent=55 // pred_check_branch
          %450 = sbr.rel (%p448) target = $region64
        $region63: #{tpu_custom_call.1} parent=55 // pred_region
          %451 = dma.done %s444, 128
        $region64: #{tpu_custom_call.1} parent=55 // pred_fallthru
          _
        %s452 = sand.u32 %s36, 1
        %s453 = scalar_lea.sflag [#allocation9], %s452
        %s454 = sand.u32 %s110, 1
        %s455 = smul.addr %s454, 8
        %s456 = scalar_lea.vmem [#allocation10], %s455
        // Predicated region
        $region65: #{tpu_custom_call.1} parent=55 // pred_check
          %p457 = pneg %p123
        $region66: #{tpu_custom_call.1} parent=55 // pred_check_branch
          %459 = sbr.rel (%p457) target = $region68
        $region67: #{tpu_custom_call.1} parent=55 // pred_region
          %460 = dma.done %s453, 128
        $region68: #{tpu_custom_call.1} parent=55 // pred_fallthru
          _
        // Predicated region
        $region69: #{tpu_custom_call.1} parent=55 // pred_check
          %p461 = pneg %p144
        $region70: #{tpu_custom_call.1} parent=55 // pred_check_branch
          %463 = sbr.rel (%p461) target = $region72
        $region71: #{tpu_custom_call.1} parent=55 // pred_region
          %464 = dma.done [#allocation12], 512
        $region72: #{tpu_custom_call.1} parent=55 // pred_fallthru
          _
        // Predicated region
        $region73: #{tpu_custom_call.1} parent=55 // pred_check
          %p465 = pneg %p186
        $region74: #{tpu_custom_call.1} parent=55 // pred_check_branch
          %467 = sbr.rel (%p465) target = $region76
        $region75: #{tpu_custom_call.1} parent=55 // pred_region
          %468 = dma.done [#allocation12], 512
        $region76: #{tpu_custom_call.1} parent=55 // pred_fallthru
          _
        // Predicated region
        $region77: #{tpu_custom_call.1} parent=55 // pred_check
          %p469 = pneg %p228
        $region78: #{tpu_custom_call.1} parent=55 // pred_check_branch
          %471 = sbr.rel (%p469) target = $region80
        $region79: #{tpu_custom_call.1} parent=55 // pred_region
          %472 = dma.done [#allocation15], 512
        $region80: #{tpu_custom_call.1} parent=55 // pred_fallthru
          _
        %s473 = sand.u32 %s58, 1
        %s474 = scalar_lea.sflag [#allocation6], %s473
        %s475 = sand.u32 %s58, 1
        %s476 = smul.addr %s475, 8
        %s477 = scalar_lea.vmem [#allocation5], %s476
        %p478 = pneg %p71
        %p479 = pneg %p68
        %s480 = sand.u32 %s36, 1
        %s481 = scalar_lea.sflag [#allocation9], %s480
        %s482 = sand.u32 %s84, 1
        %s483 = smul.addr %s482, 8
        %s484 = scalar_lea.vmem [#allocation8], %s483
        %p485 = pneg %p97
        %p486 = pneg %p94
        %s487 = sand.u32 %s36, 1
        %s488 = scalar_lea.sflag [#allocation9], %s487
        %s489 = sand.u32 %s110, 1
        %s490 = smul.addr %s489, 8
        %s491 = scalar_lea.vmem [#allocation10], %s490
        %p492 = pneg %p123
        %p493 = pneg %p120
        %p494 = pneg %p144
        %p495 = pneg %p141
        %p496 = pneg %p165
        %p497 = pneg %p162
        %p498 = pneg %p186
        %p499 = pneg %p183
        %p500 = pneg %p207
        %p501 = pneg %p204
        %p502 = pneg %p228
        %p503 = pneg %p225
        %p504 = pneg %p249
        %p505 = pneg %p246
        %p506 = pneg %p277
        %p507 = pneg %p274
        %s508 = sand.u32 %s264, 1
        %s509 = scalar_lea.sflag [#allocation7], %s508
        %s510 = sand.u32 %s264, 1
        %s511 = smul.addr %s510, 8
        %s512 = scalar_lea.vmem [#allocation16], %s511
        %p513 = pneg %p305
        %p514 = pneg %p302
        %s515 = sand.u32 %s292, 1
        %s516 = scalar_lea.sflag [#allocation18], %s515
        %s517 = sand.u32 %s292, 1
        %s518 = smul.addr %s517, 32
        %s519 = scalar_lea.vmem [#allocation17], %s518
        %p520 = scmp.eq.s32.totalorder %s41, 0
        // Predicated region
        $region81: #{tpu_custom_call.1} parent=55 // pred_check
          %p521 = pneg %p520
        $region82: #{tpu_custom_call.1} parent=55 // pred_check_branch
          %523 = sbr.rel (%p521) target = $region84
        $region83: #{tpu_custom_call.1} parent=55 // pred_region
          %v524 = vld [vmem:[%s447] sm:$0xff]
          %v525 = vld [vmem:[%s456] sm:$0xff]
          %v526 = vld [vmem:[#allocation13] sm:$0xff]
          %v527 = vld [vmem:[#allocation13 + $0x8] sm:$0xff]
          %v528 = vld [vmem:[#allocation13 + $0x10] sm:$0xff]
          %v529 = vld [vmem:[#allocation13 + $0x18] sm:$0xff]
          %v530 = vld [vmem:[%s6] sm:$0x1]
          %v532 = vlaneseq
          %v533 = vshrl.u32 %v532, 7
          %v534 = vsub.s32 0, %v533
          %v535 = vrot.slane %v530, %v534
          %vm537 = vcmask 261120
          %v539 = vsel %vm537, %v524, 0
          %541 = vmatprep.subr.mxu0 0.0
          %542 = vmatpush1.msra.mxu0 %v526
          %543 = vmatprep.subr.mxu0 0.0
          %544 = vmatpush1.msra.mxu0 %v527
          %545 = vmatprep.subr.mxu0 0.0
          %546 = vmatpush1.msra.mxu0 %v528
          %547 = vmatprep.subr.mxu0 0.0
          %548 = vmatpush1.msra.mxu0 %v529
          %549 = vmatprep.subr.mxu0 0.0
          %550 = vmatpush1.msra.mxu0 0.0
          %551 = vmatprep.subr.mxu0 0.0
          %552 = vmatpush1.msra.mxu0 0.0
          %553 = vmatprep.subr.mxu0 0.0
          %554 = vmatpush1.msra.mxu0 0.0
          %555 = vmatprep.subr.mxu0 0.0
          %556 = vmatpush1.msra.mxu0 0.0
          %557 = vmatprep.subr.mxu0 0.0
          %558 = vmatpush1.msra.mxu0 0.0
          %559 = vmatprep.subr.mxu0 0.0
          %560 = vmatpush1.msra.mxu0 0.0
          %561 = vmatprep.subr.mxu0 0.0
          %562 = vmatpush1.msra.mxu0 0.0
          %563 = vmatprep.subr.mxu0 0.0
          %564 = vmatpush1.msra.mxu0 0.0
          %565 = vmatprep.subr.mxu0 0.0
          %566 = vmatpush1.msra.mxu0 0.0
          %567 = vmatprep.subr.mxu0 0.0
          %568 = vmatpush1.msra.mxu0 0.0
          %569 = vmatprep.subr.mxu0 0.0
          %570 = vmatpush1.msra.mxu0 0.0
          %571 = vmatprep.subr.mxu0 0.0
          %572 = vmatpush1.msra.mxu0 0.0
          %573 = vmatprep.subr.mxu0 0.0
          %574 = vmatpush1.msra.mxu0 0.0
          %575 = vmatprep.subr.mxu0 0.0
          %576 = vmatpush1.msra.mxu0 0.0
          %577 = vmatprep.subr.mxu0 0.0
          %578 = vmatpush1.msra.mxu0 0.0
          %579 = vmatprep.subr.mxu0 0.0
          %580 = vmatpush1.msra.mxu0 0.0
          %581 = vmatprep.subr.mxu0 0.0
          %582 = vmatpush1.msra.mxu0 0.0
          %583 = vmatprep.subr.mxu0 0.0
          %584 = vmatpush1.msra.mxu0 0.0
          %585 = vmatprep.subr.mxu0 0.0
          %586 = vmatpush1.msra.mxu0 0.0
          %587 = vmatprep.subr.mxu0 0.0
          %588 = vmatpush1.msra.mxu0 0.0
          %589 = vmatprep.subr.mxu0 0.0
          %590 = vmatpush1.msra.mxu0 0.0
          %591 = vmatprep.subr.mxu0 0.0
          %592 = vmatpush1.msra.mxu0 0.0
          %593 = vmatprep.subr.mxu0 0.0
          %594 = vmatpush1.msra.mxu0 0.0
          %595 = vmatprep.subr.mxu0 0.0
          %596 = vmatpush1.msra.mxu0 0.0
          %597 = vmatprep.subr.mxu0 0.0
          %598 = vmatpush1.msra.mxu0 0.0
          %599 = vmatprep.subr.mxu0 0.0
          %600 = vmatpush1.msra.mxu0 0.0
          %601 = vmatprep.subr.mxu0 0.0
          %602 = vmatpush1.msra.mxu0 0.0
          %603 = vmatprep.subr.mxu0 0.0
          %604 = vmatpush1.msra.mxu0 0.0
          %605 = vmatprep.mubr.f32.mxu0 0.0
          %606 = vmatmul.mubr.f32.gmra.mrb[0].mxu0 %v539
          %v607 = vpop.f32.mrb[0].mxu0
          %v608 = vadd.f32 %v535, %v607
          %v609 = vpop.f32.mrb[0].mxu0
          %610 = vdwg.mxu0
          %v611 = vld [vmem:[#allocation14] sm:$0xff]
          %v612 = vld [vmem:[#allocation14 + $0x8] sm:$0xff]
          %v613 = vld [vmem:[#allocation14 + $0x10] sm:$0xff]
          %v614 = vld [vmem:[#allocation14 + $0x18] sm:$0xff]
          %v615 = vld [vmem:[%s8] sm:$0x1]
          %v617 = vlaneseq
          %v618 = vshrl.u32 %v617, 7
          %v619 = vsub.s32 0, %v618
          %v620 = vrot.slane %v615, %v619
          %v623 = vsel %vm537, %v525, 0
          %625 = vmatprep.subr.mxu0 0.0
          %626 = vmatpush1.msra.mxu0 %v611
          %627 = vmatprep.subr.mxu0 0.0
          %628 = vmatpush1.msra.mxu0 %v612
          %629 = vmatprep.subr.mxu0 0.0
          %630 = vmatpush1.msra.mxu0 %v613
          %631 = vmatprep.subr.mxu0 0.0
          %632 = vmatpush1.msra.mxu0 %v614
          %633 = vmatprep.subr.mxu0 0.0
          %634 = vmatpush1.msra.mxu0 0.0
          %635 = vmatprep.subr.mxu0 0.0
          %636 = vmatpush1.msra.mxu0 0.0
          %637 = vmatprep.subr.mxu0 0.0
          %638 = vmatpush1.msra.mxu0 0.0
          %639 = vmatprep.subr.mxu0 0.0
          %640 = vmatpush1.msra.mxu0 0.0
          %641 = vmatprep.subr.mxu0 0.0
          %642 = vmatpush1.msra.mxu0 0.0
          %643 = vmatprep.subr.mxu0 0.0
          %644 = vmatpush1.msra.mxu0 0.0
          %645 = vmatprep.subr.mxu0 0.0
          %646 = vmatpush1.msra.mxu0 0.0
          %647 = vmatprep.subr.mxu0 0.0
          %648 = vmatpush1.msra.mxu0 0.0
          %649 = vmatprep.subr.mxu0 0.0
          %650 = vmatpush1.msra.mxu0 0.0
          %651 = vmatprep.subr.mxu0 0.0
          %652 = vmatpush1.msra.mxu0 0.0
          %653 = vmatprep.subr.mxu0 0.0
          %654 = vmatpush1.msra.mxu0 0.0
          %655 = vmatprep.subr.mxu0 0.0
          %656 = vmatpush1.msra.mxu0 0.0
          %657 = vmatprep.subr.mxu0 0.0
          %658 = vmatpush1.msra.mxu0 0.0
          %659 = vmatprep.subr.mxu0 0.0
          %660 = vmatpush1.msra.mxu0 0.0
          %661 = vmatprep.subr.mxu0 0.0
          %662 = vmatpush1.msra.mxu0 0.0
          %663 = vmatprep.subr.mxu0 0.0
          %664 = vmatpush1.msra.mxu0 0.0
          %665 = vmatprep.subr.mxu0 0.0
          %666 = vmatpush1.msra.mxu0 0.0
          %667 = vmatprep.subr.mxu0 0.0
          %668 = vmatpush1.msra.mxu0 0.0
          %669 = vmatprep.subr.mxu0 0.0
          %670 = vmatpush1.msra.mxu0 0.0
          %671 = vmatprep.subr.mxu0 0.0
          %672 = vmatpush1.msra.mxu0 0.0
          %673 = vmatprep.subr.mxu0 0.0
          %674 = vmatpush1.msra.mxu0 0.0
          %675 = vmatprep.subr.mxu0 0.0
          %676 = vmatpush1.msra.mxu0 0.0
          %677 = vmatprep.subr.mxu0 0.0
          %678 = vmatpush1.msra.mxu0 0.0
          %679 = vmatprep.subr.mxu0 0.0
          %680 = vmatpush1.msra.mxu0 0.0
          %681 = vmatprep.subr.mxu0 0.0
          %682 = vmatpush1.msra.mxu0 0.0
          %683 = vmatprep.subr.mxu0 0.0
          %684 = vmatpush1.msra.mxu0 0.0
          %685 = vmatprep.subr.mxu0 0.0
          %686 = vmatpush1.msra.mxu0 0.0
          %687 = vmatprep.subr.mxu0 0.0
          %688 = vmatpush1.msra.mxu0 0.0
          %689 = vmatprep.mubr.f32.mxu0 0.0
          %690 = vmatmul.mubr.f32.gmra.mrb[0].mxu0 %v623
          %v691 = vpop.f32.mrb[0].mxu0
          %v692 = vadd.f32 %v620, %v691
          %v693 = vpop.f32.mrb[0].mxu0
          %694 = vdwg.mxu0
          %vm695 = vcmask 130048
          %696 = vst.msk [vmem:[#allocation2] sm:$0xff] %vm695, %v608
          %697 = vst.msk [vmem:[#allocation3] sm:$0xff] %vm695, %v692
          %699 = vrot.lane.b32.xlu0 %v608, 112
          %v700 = vpop.permute.xlu0 %699
          %s702 = scalar_lea.vmem [#allocation2], 8
          %703 = vst.msk [vmem:[%s702] sm:$0xff] %vm695, %v700
          %705 = vrot.lane.b32.xlu0 %v692, 112
          %v706 = vpop.permute.xlu0 %705
          %s708 = scalar_lea.vmem [#allocation3], 8
          %709 = vst.msk [vmem:[%s708] sm:$0xff] %vm695, %v706
          %710 = vrot.lane.b32.xlu0 %v608, 96
          %v711 = vpop.permute.xlu0 %710
          %s713 = scalar_lea.vmem [#allocation2], 16
          %714 = vst.msk [vmem:[%s713] sm:$0xff] %vm695, %v711
          %715 = vrot.lane.b32.xlu0 %v692, 96
          %v716 = vpop.permute.xlu0 %715
          %s718 = scalar_lea.vmem [#allocation3], 16
          %719 = vst.msk [vmem:[%s718] sm:$0xff] %vm695, %v716
          %720 = vrot.lane.b32.xlu0 %v608, 80
          %v721 = vpop.permute.xlu0 %720
          %s723 = scalar_lea.vmem [#allocation2], 24
          %724 = vst.msk [vmem:[%s723] sm:$0xff] %vm695, %v721
          %725 = vrot.lane.b32.xlu0 %v692, 80
          %v726 = vpop.permute.xlu0 %725
          %s728 = scalar_lea.vmem [#allocation3], 24
          %729 = vst.msk [vmem:[%s728] sm:$0xff] %vm695, %v726
        $region84: #{tpu_custom_call.1} parent=55 // pred_fallthru
          _
        %v730 = vld [vmem:[%s438] sm:$0xff]
        %v731 = vld [vmem:[#allocation11] sm:$0xff]
        %v732 = vld [vmem:[#allocation11 + $0x8] sm:$0xff]
        %v733 = vld [vmem:[#allocation11 + $0x10] sm:$0xff]
        %v734 = vld [vmem:[#allocation11 + $0x18] sm:$0xff]
        %v735 = vld [vmem:[%s4] sm:$0x1]
        %v737 = vlaneseq
        %v738 = vshrl.u32 %v737, 7
        %v739 = vsub.s32 0, %v738
        %v740 = vrot.slane %v735, %v739
        %vm742 = vcmask 261120
        %v744 = vsel %vm742, %v730, 0
        %746 = vmatprep.subr.mxu0 0.0
        %747 = vmatpush1.msra.mxu0 %v731
        %748 = vmatprep.subr.mxu0 0.0
        %749 = vmatpush1.msra.mxu0 %v732
        %750 = vmatprep.subr.mxu0 0.0
        %751 = vmatpush1.msra.mxu0 %v733
        %752 = vmatprep.subr.mxu0 0.0
        %753 = vmatpush1.msra.mxu0 %v734
        %754 = vmatprep.subr.mxu0 0.0
        %755 = vmatpush1.msra.mxu0 0.0
        %756 = vmatprep.subr.mxu0 0.0
        %757 = vmatpush1.msra.mxu0 0.0
        %758 = vmatprep.subr.mxu0 0.0
        %759 = vmatpush1.msra.mxu0 0.0
        %760 = vmatprep.subr.mxu0 0.0
        %761 = vmatpush1.msra.mxu0 0.0
        %762 = vmatprep.subr.mxu0 0.0
        %763 = vmatpush1.msra.mxu0 0.0
        %764 = vmatprep.subr.mxu0 0.0
        %765 = vmatpush1.msra.mxu0 0.0
        %766 = vmatprep.subr.mxu0 0.0
        %767 = vmatpush1.msra.mxu0 0.0
        %768 = vmatprep.subr.mxu0 0.0
        %769 = vmatpush1.msra.mxu0 0.0
        %770 = vmatprep.subr.mxu0 0.0
        %771 = vmatpush1.msra.mxu0 0.0
        %772 = vmatprep.subr.mxu0 0.0
        %773 = vmatpush1.msra.mxu0 0.0
        %774 = vmatprep.subr.mxu0 0.0
        %775 = vmatpush1.msra.mxu0 0.0
        %776 = vmatprep.subr.mxu0 0.0
        %777 = vmatpush1.msra.mxu0 0.0
        %778 = vmatprep.subr.mxu0 0.0
        %779 = vmatpush1.msra.mxu0 0.0
        %780 = vmatprep.subr.mxu0 0.0
        %781 = vmatpush1.msra.mxu0 0.0
        %782 = vmatprep.subr.mxu0 0.0
        %783 = vmatpush1.msra.mxu0 0.0
        %784 = vmatprep.subr.mxu0 0.0
        %785 = vmatpush1.msra.mxu0 0.0
        %786 = vmatprep.subr.mxu0 0.0
        %787 = vmatpush1.msra.mxu0 0.0
        %788 = vmatprep.subr.mxu0 0.0
        %789 = vmatpush1.msra.mxu0 0.0
        %790 = vmatprep.subr.mxu0 0.0
        %791 = vmatpush1.msra.mxu0 0.0
        %792 = vmatprep.subr.mxu0 0.0
        %793 = vmatpush1.msra.mxu0 0.0
        %794 = vmatprep.subr.mxu0 0.0
        %795 = vmatpush1.msra.mxu0 0.0
        %796 = vmatprep.subr.mxu0 0.0
        %797 = vmatpush1.msra.mxu0 0.0
        %798 = vmatprep.subr.mxu0 0.0
        %799 = vmatpush1.msra.mxu0 0.0
        %800 = vmatprep.subr.mxu0 0.0
        %801 = vmatpush1.msra.mxu0 0.0
        %802 = vmatprep.subr.mxu0 0.0
        %803 = vmatpush1.msra.mxu0 0.0
        %804 = vmatprep.subr.mxu0 0.0
        %805 = vmatpush1.msra.mxu0 0.0
        %806 = vmatprep.subr.mxu0 0.0
        %807 = vmatpush1.msra.mxu0 0.0
        %808 = vmatprep.subr.mxu0 0.0
        %809 = vmatpush1.msra.mxu0 0.0
        %810 = vmatprep.mubr.f32.mxu0 0.0
        %811 = vmatmul.mubr.f32.gmra.mrb[0].mxu0 %v744
        %v812 = vpop.f32.mrb[0].mxu0
        %v813 = vadd.f32 %v740, %v812
        %v814 = vpop.f32.mrb[0].mxu0
        %815 = vdwg.mxu0
        %vm816 = vcmask 130048
        %817 = vst.msk [vmem:[#allocation4] sm:$0xff] %vm816, %v813
        %819 = vrot.lane.b32.xlu0 %v813, 112
        %v820 = vpop.permute.xlu0 %819
        %s822 = scalar_lea.vmem [#allocation4], 8
        %823 = vst.msk [vmem:[%s822] sm:$0xff] %vm816, %v820
        %824 = vrot.lane.b32.xlu0 %v813, 96
        %v825 = vpop.permute.xlu0 %824
        %s827 = scalar_lea.vmem [#allocation4], 16
        %828 = vst.msk [vmem:[%s827] sm:$0xff] %vm816, %v825
        %829 = vrot.lane.b32.xlu0 %v813, 80
        %v830 = vpop.permute.xlu0 %829
        %s832 = scalar_lea.vmem [#allocation4], 24
        %833 = vst.msk [vmem:[%s832] sm:$0xff] %vm816, %v830
        %v834 = vld [vmem:[#allocation4] sm:$0xff]
        %v835 = vld [vmem:[#allocation4 + $0x8] sm:$0xff]
        %v836 = vld [vmem:[#allocation4 + $0x10] sm:$0xff]
        %v837 = vld [vmem:[#allocation4 + $0x18] sm:$0xff]
        %v838 = vld [vmem:[#allocation2] sm:$0xff]
        %v839 = vld [vmem:[#allocation2 + $0x8] sm:$0xff]
        %v840 = vld [vmem:[#allocation2 + $0x10] sm:$0xff]
        %v841 = vld [vmem:[#allocation2 + $0x18] sm:$0xff]
        %v842 = vld [vmem:[#allocation3] sm:$0xff]
        %v843 = vld [vmem:[#allocation3 + $0x8] sm:$0xff]
        %v844 = vld [vmem:[#allocation3 + $0x10] sm:$0xff]
        %v845 = vld [vmem:[#allocation3 + $0x18] sm:$0xff]
        %v847 = vsel %vm816, %v834, 0
        %v850 = vsel %vm816, %v838, 0
        %852 = vmatprep.subr.mxu0 0.0
        %853 = vmatpush1.xpose.msra.mxu0 %v850
        %854 = vmatprep.subr.mxu0 0.0
        %855 = vmatpush1.xpose.msra.mxu0 0.0
        %856 = vmatprep.subr.mxu0 0.0
        %857 = vmatpush1.xpose.msra.mxu0 0.0
        %858 = vmatprep.subr.mxu0 0.0
        %859 = vmatpush1.xpose.msra.mxu0 0.0
        %860 = vmatprep.subr.mxu0 0.0
        %861 = vmatpush1.xpose.msra.mxu0 0.0
        %862 = vmatprep.subr.mxu0 0.0
        %863 = vmatpush1.xpose.msra.mxu0 0.0
        %864 = vmatprep.subr.mxu0 0.0
        %865 = vmatpush1.xpose.msra.mxu0 0.0
        %866 = vmatprep.subr.mxu0 0.0
        %867 = vmatpush1.xpose.msra.mxu0 0.0
        %868 = vmatprep.subr.mxu0 0.0
        %869 = vmatpush1.xpose.msra.mxu0 0.0
        %870 = vmatprep.subr.mxu0 0.0
        %871 = vmatpush1.xpose.msra.mxu0 0.0
        %872 = vmatprep.subr.mxu0 0.0
        %873 = vmatpush1.xpose.msra.mxu0 0.0
        %874 = vmatprep.subr.mxu0 0.0
        %875 = vmatpush1.xpose.msra.mxu0 0.0
        %876 = vmatprep.subr.mxu0 0.0
        %877 = vmatpush1.xpose.msra.mxu0 0.0
        %878 = vmatprep.subr.mxu0 0.0
        %879 = vmatpush1.xpose.msra.mxu0 0.0
        %880 = vmatprep.subr.mxu0 0.0
        %881 = vmatpush1.xpose.msra.mxu0 0.0
        %882 = vmatprep.subr.mxu0 0.0
        %883 = vmatpush1.xpose.msra.mxu0 0.0
        %884 = vmatprep.subr.mxu0 0.0
        %885 = vmatpush1.xpose.msra.mxu0 0.0
        %886 = vmatprep.subr.mxu0 0.0
        %887 = vmatpush1.xpose.msra.mxu0 0.0
        %888 = vmatprep.subr.mxu0 0.0
        %889 = vmatpush1.xpose.msra.mxu0 0.0
        %890 = vmatprep.subr.mxu0 0.0
        %891 = vmatpush1.xpose.msra.mxu0 0.0
        %892 = vmatprep.subr.mxu0 0.0
        %893 = vmatpush1.xpose.msra.mxu0 0.0
        %894 = vmatprep.subr.mxu0 0.0
        %895 = vmatpush1.xpose.msra.mxu0 0.0
        %896 = vmatprep.subr.mxu0 0.0
        %897 = vmatpush1.xpose.msra.mxu0 0.0
        %898 = vmatprep.subr.mxu0 0.0
        %899 = vmatpush1.xpose.msra.mxu0 0.0
        %900 = vmatprep.subr.mxu0 0.0
        %901 = vmatpush1.xpose.msra.mxu0 0.0
        %902 = vmatprep.subr.mxu0 0.0
        %903 = vmatpush1.xpose.msra.mxu0 0.0
        %904 = vmatprep.subr.mxu0 0.0
        %905 = vmatpush1.xpose.msra.mxu0 0.0
        %906 = vmatprep.subr.mxu0 0.0
        %907 = vmatpush1.xpose.msra.mxu0 0.0
        %908 = vmatprep.subr.mxu0 0.0
        %909 = vmatpush1.xpose.msra.mxu0 0.0
        %910 = vmatprep.subr.mxu0 0.0
        %911 = vmatpush1.xpose.msra.mxu0 0.0
        %912 = vmatprep.subr.mxu0 0.0
        %913 = vmatpush1.xpose.msra.mxu0 0.0
        %914 = vmatprep.subr.mxu0 0.0
        %915 = vmatpush1.xpose.msra.mxu0 0.0
        %916 = vmatprep.mubr.f32.mxu0 0.0
        %917 = vmatmul.mubr.f32.gmra.mrb[0].mxu0 %v847
        %v918 = vpop.f32.mrb[0].mxu0
        %v919 = vadd.f32 0.0, %v918
        %v920 = vpop.f32.mrb[0].mxu0
        %921 = vdwg.mxu0
        %v923 = vsel %vm816, %v835, 0
        %v926 = vsel %vm816, %v839, 0
        %928 = vmatprep.subr.mxu0 0.0
        %929 = vmatpush1.xpose.msra.mxu0 %v926
        %930 = vmatprep.subr.mxu0 0.0
        %931 = vmatpush1.xpose.msra.mxu0 0.0
        %932 = vmatprep.subr.mxu0 0.0
        %933 = vmatpush1.xpose.msra.mxu0 0.0
        %934 = vmatprep.subr.mxu0 0.0
        %935 = vmatpush1.xpose.msra.mxu0 0.0
        %936 = vmatprep.subr.mxu0 0.0
        %937 = vmatpush1.xpose.msra.mxu0 0.0
        %938 = vmatprep.subr.mxu0 0.0
        %939 = vmatpush1.xpose.msra.mxu0 0.0
        %940 = vmatprep.subr.mxu0 0.0
        %941 = vmatpush1.xpose.msra.mxu0 0.0
        %942 = vmatprep.subr.mxu0 0.0
        %943 = vmatpush1.xpose.msra.mxu0 0.0
        %944 = vmatprep.subr.mxu0 0.0
        %945 = vmatpush1.xpose.msra.mxu0 0.0
        %946 = vmatprep.subr.mxu0 0.0
        %947 = vmatpush1.xpose.msra.mxu0 0.0
        %948 = vmatprep.subr.mxu0 0.0
        %949 = vmatpush1.xpose.msra.mxu0 0.0
        %950 = vmatprep.subr.mxu0 0.0
        %951 = vmatpush1.xpose.msra.mxu0 0.0
        %952 = vmatprep.subr.mxu0 0.0
        %953 = vmatpush1.xpose.msra.mxu0 0.0
        %954 = vmatprep.subr.mxu0 0.0
        %955 = vmatpush1.xpose.msra.mxu0 0.0
        %956 = vmatprep.subr.mxu0 0.0
        %957 = vmatpush1.xpose.msra.mxu0 0.0
        %958 = vmatprep.subr.mxu0 0.0
        %959 = vmatpush1.xpose.msra.mxu0 0.0
        %960 = vmatprep.subr.mxu0 0.0
        %961 = vmatpush1.xpose.msra.mxu0 0.0
        %962 = vmatprep.subr.mxu0 0.0
        %963 = vmatpush1.xpose.msra.mxu0 0.0
        %964 = vmatprep.subr.mxu0 0.0
        %965 = vmatpush1.xpose.msra.mxu0 0.0
        %966 = vmatprep.subr.mxu0 0.0
        %967 = vmatpush1.xpose.msra.mxu0 0.0
        %968 = vmatprep.subr.mxu0 0.0
        %969 = vmatpush1.xpose.msra.mxu0 0.0
        %970 = vmatprep.subr.mxu0 0.0
        %971 = vmatpush1.xpose.msra.mxu0 0.0
        %972 = vmatprep.subr.mxu0 0.0
        %973 = vmatpush1.xpose.msra.mxu0 0.0
        %974 = vmatprep.subr.mxu0 0.0
        %975 = vmatpush1.xpose.msra.mxu0 0.0
        %976 = vmatprep.subr.mxu0 0.0
        %977 = vmatpush1.xpose.msra.mxu0 0.0
        %978 = vmatprep.subr.mxu0 0.0
        %979 = vmatpush1.xpose.msra.mxu0 0.0
        %980 = vmatprep.subr.mxu0 0.0
        %981 = vmatpush1.xpose.msra.mxu0 0.0
        %982 = vmatprep.subr.mxu0 0.0
        %983 = vmatpush1.xpose.msra.mxu0 0.0
        %984 = vmatprep.subr.mxu0 0.0
        %985 = vmatpush1.xpose.msra.mxu0 0.0
        %986 = vmatprep.subr.mxu0 0.0
        %987 = vmatpush1.xpose.msra.mxu0 0.0
        %988 = vmatprep.subr.mxu0 0.0
        %989 = vmatpush1.xpose.msra.mxu0 0.0
        %990 = vmatprep.subr.mxu0 0.0
        %991 = vmatpush1.xpose.msra.mxu0 0.0
        %992 = vmatprep.mubr.f32.mxu0 0.0
        %993 = vmatmul.mubr.f32.gmra.mrb[0].mxu0 %v923
        %v994 = vpop.f32.mrb[0].mxu0
        %v995 = vadd.f32 0.0, %v994
        %v996 = vpop.f32.mrb[0].mxu0
        %997 = vdwg.mxu0
        %v999 = vsel %vm816, %v836, 0
        %v1002 = vsel %vm816, %v840, 0
        %1004 = vmatprep.subr.mxu0 0.0
        %1005 = vmatpush1.xpose.msra.mxu0 %v1002
        %1006 = vmatprep.subr.mxu0 0.0
        %1007 = vmatpush1.xpose.msra.mxu0 0.0
        %1008 = vmatprep.subr.mxu0 0.0
        %1009 = vmatpush1.xpose.msra.mxu0 0.0
        %1010 = vmatprep.subr.mxu0 0.0
        %1011 = vmatpush1.xpose.msra.mxu0 0.0
        %1012 = vmatprep.subr.mxu0 0.0
        %1013 = vmatpush1.xpose.msra.mxu0 0.0
        %1014 = vmatprep.subr.mxu0 0.0
        %1015 = vmatpush1.xpose.msra.mxu0 0.0
        %1016 = vmatprep.subr.mxu0 0.0
        %1017 = vmatpush1.xpose.msra.mxu0 0.0
        %1018 = vmatprep.subr.mxu0 0.0
        %1019 = vmatpush1.xpose.msra.mxu0 0.0
        %1020 = vmatprep.subr.mxu0 0.0
        %1021 = vmatpush1.xpose.msra.mxu0 0.0
        %1022 = vmatprep.subr.mxu0 0.0
        %1023 = vmatpush1.xpose.msra.mxu0 0.0
        %1024 = vmatprep.subr.mxu0 0.0
        %1025 = vmatpush1.xpose.msra.mxu0 0.0
        %1026 = vmatprep.subr.mxu0 0.0
        %1027 = vmatpush1.xpose.msra.mxu0 0.0
        %1028 = vmatprep.subr.mxu0 0.0
        %1029 = vmatpush1.xpose.msra.mxu0 0.0
        %1030 = vmatprep.subr.mxu0 0.0
        %1031 = vmatpush1.xpose.msra.mxu0 0.0
        %1032 = vmatprep.subr.mxu0 0.0
        %1033 = vmatpush1.xpose.msra.mxu0 0.0
        %1034 = vmatprep.subr.mxu0 0.0
        %1035 = vmatpush1.xpose.msra.mxu0 0.0
        %1036 = vmatprep.subr.mxu0 0.0
        %1037 = vmatpush1.xpose.msra.mxu0 0.0
        %1038 = vmatprep.subr.mxu0 0.0
        %1039 = vmatpush1.xpose.msra.mxu0 0.0
        %1040 = vmatprep.subr.mxu0 0.0
        %1041 = vmatpush1.xpose.msra.mxu0 0.0
        %1042 = vmatprep.subr.mxu0 0.0
        %1043 = vmatpush1.xpose.msra.mxu0 0.0
        %1044 = vmatprep.subr.mxu0 0.0
        %1045 = vmatpush1.xpose.msra.mxu0 0.0
        %1046 = vmatprep.subr.mxu0 0.0
        %1047 = vmatpush1.xpose.msra.mxu0 0.0
        %1048 = vmatprep.subr.mxu0 0.0
        %1049 = vmatpush1.xpose.msra.mxu0 0.0
        %1050 = vmatprep.subr.mxu0 0.0
        %1051 = vmatpush1.xpose.msra.mxu0 0.0
        %1052 = vmatprep.subr.mxu0 0.0
        %1053 = vmatpush1.xpose.msra.mxu0 0.0
        %1054 = vmatprep.subr.mxu0 0.0
        %1055 = vmatpush1.xpose.msra.mxu0 0.0
        %1056 = vmatprep.subr.mxu0 0.0
        %1057 = vmatpush1.xpose.msra.mxu0 0.0
        %1058 = vmatprep.subr.mxu0 0.0
        %1059 = vmatpush1.xpose.msra.mxu0 0.0
        %1060 = vmatprep.subr.mxu0 0.0
        %1061 = vmatpush1.xpose.msra.mxu0 0.0
        %1062 = vmatprep.subr.mxu0 0.0
        %1063 = vmatpush1.xpose.msra.mxu0 0.0
        %1064 = vmatprep.subr.mxu0 0.0
        %1065 = vmatpush1.xpose.msra.mxu0 0.0
        %1066 = vmatprep.subr.mxu0 0.0
        %1067 = vmatpush1.xpose.msra.mxu0 0.0
        %1068 = vmatprep.mubr.f32.mxu0 0.0
        %1069 = vmatmul.mubr.f32.gmra.mrb[0].mxu0 %v999
        %v1070 = vpop.f32.mrb[0].mxu0
        %v1071 = vadd.f32 0.0, %v1070
        %v1072 = vpop.f32.mrb[0].mxu0
        %1073 = vdwg.mxu0
        %v1075 = vsel %vm816, %v837, 0
        %v1078 = vsel %vm816, %v841, 0
        %1080 = vmatprep.subr.mxu0 0.0
        %1081 = vmatpush1.xpose.msra.mxu0 %v1078
        %1082 = vmatprep.subr.mxu0 0.0
        %1083 = vmatpush1.xpose.msra.mxu0 0.0
        %1084 = vmatprep.subr.mxu0 0.0
        %1085 = vmatpush1.xpose.msra.mxu0 0.0
        %1086 = vmatprep.subr.mxu0 0.0
        %1087 = vmatpush1.xpose.msra.mxu0 0.0
        %1088 = vmatprep.subr.mxu0 0.0
        %1089 = vmatpush1.xpose.msra.mxu0 0.0
        %1090 = vmatprep.subr.mxu0 0.0
        %1091 = vmatpush1.xpose.msra.mxu0 0.0
        %1092 = vmatprep.subr.mxu0 0.0
        %1093 = vmatpush1.xpose.msra.mxu0 0.0
        %1094 = vmatprep.subr.mxu0 0.0
        %1095 = vmatpush1.xpose.msra.mxu0 0.0
        %1096 = vmatprep.subr.mxu0 0.0
        %1097 = vmatpush1.xpose.msra.mxu0 0.0
        %1098 = vmatprep.subr.mxu0 0.0
        %1099 = vmatpush1.xpose.msra.mxu0 0.0
        %1100 = vmatprep.subr.mxu0 0.0
        %1101 = vmatpush1.xpose.msra.mxu0 0.0
        %1102 = vmatprep.subr.mxu0 0.0
        %1103 = vmatpush1.xpose.msra.mxu0 0.0
        %1104 = vmatprep.subr.mxu0 0.0
        %1105 = vmatpush1.xpose.msra.mxu0 0.0
        %1106 = vmatprep.subr.mxu0 0.0
        %1107 = vmatpush1.xpose.msra.mxu0 0.0
        %1108 = vmatprep.subr.mxu0 0.0
        %1109 = vmatpush1.xpose.msra.mxu0 0.0
        %1110 = vmatprep.subr.mxu0 0.0
        %1111 = vmatpush1.xpose.msra.mxu0 0.0
        %1112 = vmatprep.subr.mxu0 0.0
        %1113 = vmatpush1.xpose.msra.mxu0 0.0
        %1114 = vmatprep.subr.mxu0 0.0
        %1115 = vmatpush1.xpose.msra.mxu0 0.0
        %1116 = vmatprep.subr.mxu0 0.0
        %1117 = vmatpush1.xpose.msra.mxu0 0.0
        %1118 = vmatprep.subr.mxu0 0.0
        %1119 = vmatpush1.xpose.msra.mxu0 0.0
        %1120 = vmatprep.subr.mxu0 0.0
        %1121 = vmatpush1.xpose.msra.mxu0 0.0
        %1122 = vmatprep.subr.mxu0 0.0
        %1123 = vmatpush1.xpose.msra.mxu0 0.0
        %1124 = vmatprep.subr.mxu0 0.0
        %1125 = vmatpush1.xpose.msra.mxu0 0.0
        %1126 = vmatprep.subr.mxu0 0.0
        %1127 = vmatpush1.xpose.msra.mxu0 0.0
        %1128 = vmatprep.subr.mxu0 0.0
        %1129 = vmatpush1.xpose.msra.mxu0 0.0
        %1130 = vmatprep.subr.mxu0 0.0
        %1131 = vmatpush1.xpose.msra.mxu0 0.0
        %1132 = vmatprep.subr.mxu0 0.0
        %1133 = vmatpush1.xpose.msra.mxu0 0.0
        %1134 = vmatprep.subr.mxu0 0.0
        %1135 = vmatpush1.xpose.msra.mxu0 0.0
        %1136 = vmatprep.subr.mxu0 0.0
        %1137 = vmatpush1.xpose.msra.mxu0 0.0
        %1138 = vmatprep.subr.mxu0 0.0
        %1139 = vmatpush1.xpose.msra.mxu0 0.0
        %1140 = vmatprep.subr.mxu0 0.0
        %1141 = vmatpush1.xpose.msra.mxu0 0.0
        %1142 = vmatprep.subr.mxu0 0.0
        %1143 = vmatpush1.xpose.msra.mxu0 0.0
        %1144 = vmatprep.mubr.f32.mxu0 0.0
        %1145 = vmatmul.mubr.f32.gmra.mrb[0].mxu0 %v1075
        %v1146 = vpop.f32.mrb[0].mxu0
        %v1147 = vadd.f32 0.0, %v1146
        %v1148 = vpop.f32.mrb[0].mxu0
        %1149 = vdwg.mxu0
        %vm1150 = vcmask 64512
        %v1151 = vsel %vm1150, %v919, -inf
        %1152 = vmax.xlane.f32.xlu0 %v1151
        %v1153 = vpop.xlane.xlu0 %1152
        %v1154 = vsel %vm1150, %v995, -inf
        %1155 = vmax.xlane.f32.xlu0 %v1154
        %v1156 = vpop.xlane.xlu0 %1155
        %v1157 = vsel %vm1150, %v1071, -inf
        %1158 = vmax.xlane.f32.xlu0 %v1157
        %v1159 = vpop.xlane.xlu0 %1158
        %v1160 = vsel %vm1150, %v1147, -inf
        %1161 = vmax.xlane.f32.xlu0 %v1160
        %v1162 = vpop.xlane.xlu0 %1161
        %v1163 = vsub.f32 %v919, %v1153
        %v1164 = vsub.f32 %v995, %v1156
        %v1165 = vsub.f32 %v1071, %v1159
        %v1166 = vsub.f32 %v1147, %v1162
        %v1167 = vmul.f32 %v1163, 1.442695
        %v1168 = vpow.pop %v1167
        %v1169 = vmul.f32 %v1164, 1.442695
        %v1170 = vpow.pop %v1169
        %v1171 = vmul.f32 %v1165, 1.442695
        %v1172 = vpow.pop %v1171
        %v1173 = vmul.f32 %v1166, 1.442695
        %v1174 = vpow.pop %v1173
        %v1175 = vsel %vm1150, %v1168, 0.0
        %1176 = vadd.xlane.f32.xlu0 %v1175
        %v1177 = vpop.xlane.xlu0 %1176
        %v1178 = vsel %vm1150, %v1170, 0.0
        %1179 = vadd.xlane.f32.xlu0 %v1178
        %v1180 = vpop.xlane.xlu0 %1179
        %v1181 = vsel %vm1150, %v1172, 0.0
        %1182 = vadd.xlane.f32.xlu0 %v1181
        %v1183 = vpop.xlane.xlu0 %1182
        %v1184 = vsel %vm1150, %v1174, 0.0
        %1185 = vadd.xlane.f32.xlu0 %v1184
        %v1186 = vpop.xlane.xlu0 %1185
        %v1187 = vrcp.pop %v1177
        %v1188 = vrcp.pop %v1180
        %v1189 = vrcp.pop %v1183
        %v1190 = vrcp.pop %v1186
        %v1191 = vmul.f32 %v1168, %v1187
        %v1192 = vmul.f32 %v1170, %v1188
        %v1193 = vmul.f32 %v1172, %v1189
        %v1194 = vmul.f32 %v1174, %v1190
        %1195 = vst.msk [vmem:[%s519] sm:$0xff] %vm1150, %v1191
        %1196 = vst.msk [vmem:[%s519 + $0x8] sm:$0xff] %vm1150, %v1192
        %1197 = vst.msk [vmem:[%s519 + $0x10] sm:$0xff] %vm1150, %v1193
        %1198 = vst.msk [vmem:[%s519 + $0x18] sm:$0xff] %vm1150, %v1194
        %v1200 = vsel %vm1150, %v1191, 0
        %1202 = vmatprep.subr.mxu0 0.0
        %1203 = vmatpush1.msra.mxu0 %v842
        %1204 = vmatprep.subr.mxu0 0.0
        %1205 = vmatpush1.msra.mxu0 0.0
        %1206 = vmatprep.subr.mxu0 0.0
        %1207 = vmatpush1.msra.mxu0 0.0
        %1208 = vmatprep.subr.mxu0 0.0
        %1209 = vmatpush1.msra.mxu0 0.0
        %1210 = vmatprep.subr.mxu0 0.0
        %1211 = vmatpush1.msra.mxu0 0.0
        %1212 = vmatprep.subr.mxu0 0.0
        %1213 = vmatpush1.msra.mxu0 0.0
        %1214 = vmatprep.subr.mxu0 0.0
        %1215 = vmatpush1.msra.mxu0 0.0
        %1216 = vmatprep.subr.mxu0 0.0
        %1217 = vmatpush1.msra.mxu0 0.0
        %1218 = vmatprep.subr.mxu0 0.0
        %1219 = vmatpush1.msra.mxu0 0.0
        %1220 = vmatprep.subr.mxu0 0.0
        %1221 = vmatpush1.msra.mxu0 0.0
        %1222 = vmatprep.subr.mxu0 0.0
        %1223 = vmatpush1.msra.mxu0 0.0
        %1224 = vmatprep.subr.mxu0 0.0
        %1225 = vmatpush1.msra.mxu0 0.0
        %1226 = vmatprep.subr.mxu0 0.0
        %1227 = vmatpush1.msra.mxu0 0.0
        %1228 = vmatprep.subr.mxu0 0.0
        %1229 = vmatpush1.msra.mxu0 0.0
        %1230 = vmatprep.subr.mxu0 0.0
        %1231 = vmatpush1.msra.mxu0 0.0
        %1232 = vmatprep.subr.mxu0 0.0
        %1233 = vmatpush1.msra.mxu0 0.0
        %1234 = vmatprep.subr.mxu0 0.0
        %1235 = vmatpush1.msra.mxu0 0.0
        %1236 = vmatprep.subr.mxu0 0.0
        %1237 = vmatpush1.msra.mxu0 0.0
        %1238 = vmatprep.subr.mxu0 0.0
        %1239 = vmatpush1.msra.mxu0 0.0
        %1240 = vmatprep.subr.mxu0 0.0
        %1241 = vmatpush1.msra.mxu0 0.0
        %1242 = vmatprep.subr.mxu0 0.0
        %1243 = vmatpush1.msra.mxu0 0.0
        %1244 = vmatprep.subr.mxu0 0.0
        %1245 = vmatpush1.msra.mxu0 0.0
        %1246 = vmatprep.subr.mxu0 0.0
        %1247 = vmatpush1.msra.mxu0 0.0
        %1248 = vmatprep.subr.mxu0 0.0
        %1249 = vmatpush1.msra.mxu0 0.0
        %1250 = vmatprep.subr.mxu0 0.0
        %1251 = vmatpush1.msra.mxu0 0.0
        %1252 = vmatprep.subr.mxu0 0.0
        %1253 = vmatpush1.msra.mxu0 0.0
        %1254 = vmatprep.subr.mxu0 0.0
        %1255 = vmatpush1.msra.mxu0 0.0
        %1256 = vmatprep.subr.mxu0 0.0
        %1257 = vmatpush1.msra.mxu0 0.0
        %1258 = vmatprep.subr.mxu0 0.0
        %1259 = vmatpush1.msra.mxu0 0.0
        %1260 = vmatprep.subr.mxu0 0.0
        %1261 = vmatpush1.msra.mxu0 0.0
        %1262 = vmatprep.subr.mxu0 0.0
        %1263 = vmatpush1.msra.mxu0 0.0
        %1264 = vmatprep.subr.mxu0 0.0
        %1265 = vmatpush1.msra.mxu0 0.0
        %1266 = vmatprep.mubr.f32.mxu0 0.0
        %1267 = vmatmul.mubr.f32.gmra.mrb[0].mxu0 %v1200
        %v1268 = vpop.f32.mrb[0].mxu0
        %v1269 = vadd.f32 0.0, %v1268
        %v1270 = vpop.f32.mrb[0].mxu0
        %1271 = vdwg.mxu0
        %v1273 = vsel %vm1150, %v1192, 0
        %1275 = vmatprep.subr.mxu0 0.0
        %1276 = vmatpush1.msra.mxu0 %v843
        %1277 = vmatprep.subr.mxu0 0.0
        %1278 = vmatpush1.msra.mxu0 0.0
        %1279 = vmatprep.subr.mxu0 0.0
        %1280 = vmatpush1.msra.mxu0 0.0
        %1281 = vmatprep.subr.mxu0 0.0
        %1282 = vmatpush1.msra.mxu0 0.0
        %1283 = vmatprep.subr.mxu0 0.0
        %1284 = vmatpush1.msra.mxu0 0.0
        %1285 = vmatprep.subr.mxu0 0.0
        %1286 = vmatpush1.msra.mxu0 0.0
        %1287 = vmatprep.subr.mxu0 0.0
        %1288 = vmatpush1.msra.mxu0 0.0
        %1289 = vmatprep.subr.mxu0 0.0
        %1290 = vmatpush1.msra.mxu0 0.0
        %1291 = vmatprep.subr.mxu0 0.0
        %1292 = vmatpush1.msra.mxu0 0.0
        %1293 = vmatprep.subr.mxu0 0.0
        %1294 = vmatpush1.msra.mxu0 0.0
        %1295 = vmatprep.subr.mxu0 0.0
        %1296 = vmatpush1.msra.mxu0 0.0
        %1297 = vmatprep.subr.mxu0 0.0
        %1298 = vmatpush1.msra.mxu0 0.0
        %1299 = vmatprep.subr.mxu0 0.0
        %1300 = vmatpush1.msra.mxu0 0.0
        %1301 = vmatprep.subr.mxu0 0.0
        %1302 = vmatpush1.msra.mxu0 0.0
        %1303 = vmatprep.subr.mxu0 0.0
        %1304 = vmatpush1.msra.mxu0 0.0
        %1305 = vmatprep.subr.mxu0 0.0
        %1306 = vmatpush1.msra.mxu0 0.0
        %1307 = vmatprep.subr.mxu0 0.0
        %1308 = vmatpush1.msra.mxu0 0.0
        %1309 = vmatprep.subr.mxu0 0.0
        %1310 = vmatpush1.msra.mxu0 0.0
        %1311 = vmatprep.subr.mxu0 0.0
        %1312 = vmatpush1.msra.mxu0 0.0
        %1313 = vmatprep.subr.mxu0 0.0
        %1314 = vmatpush1.msra.mxu0 0.0
        %1315 = vmatprep.subr.mxu0 0.0
        %1316 = vmatpush1.msra.mxu0 0.0
        %1317 = vmatprep.subr.mxu0 0.0
        %1318 = vmatpush1.msra.mxu0 0.0
        %1319 = vmatprep.subr.mxu0 0.0
        %1320 = vmatpush1.msra.mxu0 0.0
        %1321 = vmatprep.subr.mxu0 0.0
        %1322 = vmatpush1.msra.mxu0 0.0
        %1323 = vmatprep.subr.mxu0 0.0
        %1324 = vmatpush1.msra.mxu0 0.0
        %1325 = vmatprep.subr.mxu0 0.0
        %1326 = vmatpush1.msra.mxu0 0.0
        %1327 = vmatprep.subr.mxu0 0.0
        %1328 = vmatpush1.msra.mxu0 0.0
        %1329 = vmatprep.subr.mxu0 0.0
        %1330 = vmatpush1.msra.mxu0 0.0
        %1331 = vmatprep.subr.mxu0 0.0
        %1332 = vmatpush1.msra.mxu0 0.0
        %1333 = vmatprep.subr.mxu0 0.0
        %1334 = vmatpush1.msra.mxu0 0.0
        %1335 = vmatprep.subr.mxu0 0.0
        %1336 = vmatpush1.msra.mxu0 0.0
        %1337 = vmatprep.subr.mxu0 0.0
        %1338 = vmatpush1.msra.mxu0 0.0
        %1339 = vmatprep.mubr.f32.mxu0 0.0
        %1340 = vmatmul.mubr.f32.gmra.mrb[0].mxu0 %v1273
        %v1341 = vpop.f32.mrb[0].mxu0
        %v1342 = vadd.f32 0.0, %v1341
        %v1343 = vpop.f32.mrb[0].mxu0
        %1344 = vdwg.mxu0
        %v1346 = vsel %vm1150, %v1193, 0
        %1348 = vmatprep.subr.mxu0 0.0
        %1349 = vmatpush1.msra.mxu0 %v844
        %1350 = vmatprep.subr.mxu0 0.0
        %1351 = vmatpush1.msra.mxu0 0.0
        %1352 = vmatprep.subr.mxu0 0.0
        %1353 = vmatpush1.msra.mxu0 0.0
        %1354 = vmatprep.subr.mxu0 0.0
        %1355 = vmatpush1.msra.mxu0 0.0
        %1356 = vmatprep.subr.mxu0 0.0
        %1357 = vmatpush1.msra.mxu0 0.0
        %1358 = vmatprep.subr.mxu0 0.0
        %1359 = vmatpush1.msra.mxu0 0.0
        %1360 = vmatprep.subr.mxu0 0.0
        %1361 = vmatpush1.msra.mxu0 0.0
        %1362 = vmatprep.subr.mxu0 0.0
        %1363 = vmatpush1.msra.mxu0 0.0
        %1364 = vmatprep.subr.mxu0 0.0
        %1365 = vmatpush1.msra.mxu0 0.0
        %1366 = vmatprep.subr.mxu0 0.0
        %1367 = vmatpush1.msra.mxu0 0.0
        %1368 = vmatprep.subr.mxu0 0.0
        %1369 = vmatpush1.msra.mxu0 0.0
        %1370 = vmatprep.subr.mxu0 0.0
        %1371 = vmatpush1.msra.mxu0 0.0
        %1372 = vmatprep.subr.mxu0 0.0
        %1373 = vmatpush1.msra.mxu0 0.0
        %1374 = vmatprep.subr.mxu0 0.0
        %1375 = vmatpush1.msra.mxu0 0.0
        %1376 = vmatprep.subr.mxu0 0.0
        %1377 = vmatpush1.msra.mxu0 0.0
        %1378 = vmatprep.subr.mxu0 0.0
        %1379 = vmatpush1.msra.mxu0 0.0
        %1380 = vmatprep.subr.mxu0 0.0
        %1381 = vmatpush1.msra.mxu0 0.0
        %1382 = vmatprep.subr.mxu0 0.0
        %1383 = vmatpush1.msra.mxu0 0.0
        %1384 = vmatprep.subr.mxu0 0.0
        %1385 = vmatpush1.msra.mxu0 0.0
        %1386 = vmatprep.subr.mxu0 0.0
        %1387 = vmatpush1.msra.mxu0 0.0
        %1388 = vmatprep.subr.mxu0 0.0
        %1389 = vmatpush1.msra.mxu0 0.0
        %1390 = vmatprep.subr.mxu0 0.0
        %1391 = vmatpush1.msra.mxu0 0.0
        %1392 = vmatprep.subr.mxu0 0.0
        %1393 = vmatpush1.msra.mxu0 0.0
        %1394 = vmatprep.subr.mxu0 0.0
        %1395 = vmatpush1.msra.mxu0 0.0
        %1396 = vmatprep.subr.mxu0 0.0
        %1397 = vmatpush1.msra.mxu0 0.0
        %1398 = vmatprep.subr.mxu0 0.0
        %1399 = vmatpush1.msra.mxu0 0.0
        %1400 = vmatprep.subr.mxu0 0.0
        %1401 = vmatpush1.msra.mxu0 0.0
        %1402 = vmatprep.subr.mxu0 0.0
        %1403 = vmatpush1.msra.mxu0 0.0
        %1404 = vmatprep.subr.mxu0 0.0
        %1405 = vmatpush1.msra.mxu0 0.0
        %1406 = vmatprep.subr.mxu0 0.0
        %1407 = vmatpush1.msra.mxu0 0.0
        %1408 = vmatprep.subr.mxu0 0.0
        %1409 = vmatpush1.msra.mxu0 0.0
        %1410 = vmatprep.subr.mxu0 0.0
        %1411 = vmatpush1.msra.mxu0 0.0
        %1412 = vmatprep.mubr.f32.mxu0 0.0
        %1413 = vmatmul.mubr.f32.gmra.mrb[0].mxu0 %v1346
        %v1414 = vpop.f32.mrb[0].mxu0
        %v1415 = vadd.f32 0.0, %v1414
        %v1416 = vpop.f32.mrb[0].mxu0
        %1417 = vdwg.mxu0
        %v1419 = vsel %vm1150, %v1194, 0
        %1421 = vmatprep.subr.mxu0 0.0
        %1422 = vmatpush1.msra.mxu0 %v845
        %1423 = vmatprep.subr.mxu0 0.0
        %1424 = vmatpush1.msra.mxu0 0.0
        %1425 = vmatprep.subr.mxu0 0.0
        %1426 = vmatpush1.msra.mxu0 0.0
        %1427 = vmatprep.subr.mxu0 0.0
        %1428 = vmatpush1.msra.mxu0 0.0
        %1429 = vmatprep.subr.mxu0 0.0
        %1430 = vmatpush1.msra.mxu0 0.0
        %1431 = vmatprep.subr.mxu0 0.0
        %1432 = vmatpush1.msra.mxu0 0.0
        %1433 = vmatprep.subr.mxu0 0.0
        %1434 = vmatpush1.msra.mxu0 0.0
        %1435 = vmatprep.subr.mxu0 0.0
        %1436 = vmatpush1.msra.mxu0 0.0
        %1437 = vmatprep.subr.mxu0 0.0
        %1438 = vmatpush1.msra.mxu0 0.0
        %1439 = vmatprep.subr.mxu0 0.0
        %1440 = vmatpush1.msra.mxu0 0.0
        %1441 = vmatprep.subr.mxu0 0.0
        %1442 = vmatpush1.msra.mxu0 0.0
        %1443 = vmatprep.subr.mxu0 0.0
        %1444 = vmatpush1.msra.mxu0 0.0
        %1445 = vmatprep.subr.mxu0 0.0
        %1446 = vmatpush1.msra.mxu0 0.0
        %1447 = vmatprep.subr.mxu0 0.0
        %1448 = vmatpush1.msra.mxu0 0.0
        %1449 = vmatprep.subr.mxu0 0.0
        %1450 = vmatpush1.msra.mxu0 0.0
        %1451 = vmatprep.subr.mxu0 0.0
        %1452 = vmatpush1.msra.mxu0 0.0
        %1453 = vmatprep.subr.mxu0 0.0
        %1454 = vmatpush1.msra.mxu0 0.0
        %1455 = vmatprep.subr.mxu0 0.0
        %1456 = vmatpush1.msra.mxu0 0.0
        %1457 = vmatprep.subr.mxu0 0.0
        %1458 = vmatpush1.msra.mxu0 0.0
        %1459 = vmatprep.subr.mxu0 0.0
        %1460 = vmatpush1.msra.mxu0 0.0
        %1461 = vmatprep.subr.mxu0 0.0
        %1462 = vmatpush1.msra.mxu0 0.0
        %1463 = vmatprep.subr.mxu0 0.0
        %1464 = vmatpush1.msra.mxu0 0.0
        %1465 = vmatprep.subr.mxu0 0.0
        %1466 = vmatpush1.msra.mxu0 0.0
        %1467 = vmatprep.subr.mxu0 0.0
        %1468 = vmatpush1.msra.mxu0 0.0
        %1469 = vmatprep.subr.mxu0 0.0
        %1470 = vmatpush1.msra.mxu0 0.0
        %1471 = vmatprep.subr.mxu0 0.0
        %1472 = vmatpush1.msra.mxu0 0.0
        %1473 = vmatprep.subr.mxu0 0.0
        %1474 = vmatpush1.msra.mxu0 0.0
        %1475 = vmatprep.subr.mxu0 0.0
        %1476 = vmatpush1.msra.mxu0 0.0
        %1477 = vmatprep.subr.mxu0 0.0
        %1478 = vmatpush1.msra.mxu0 0.0
        %1479 = vmatprep.subr.mxu0 0.0
        %1480 = vmatpush1.msra.mxu0 0.0
        %1481 = vmatprep.subr.mxu0 0.0
        %1482 = vmatpush1.msra.mxu0 0.0
        %1483 = vmatprep.subr.mxu0 0.0
        %1484 = vmatpush1.msra.mxu0 0.0
        %1485 = vmatprep.mubr.f32.mxu0 0.0
        %1486 = vmatmul.mubr.f32.gmra.mrb[0].mxu0 %v1419
        %v1487 = vpop.f32.mrb[0].mxu0
        %v1488 = vadd.f32 0.0, %v1487
        %v1489 = vpop.f32.mrb[0].mxu0
        %1490 = vdwg.mxu0
        %1492 = vrot.lane.b32.xlu0 %v1342, 16
        %v1493 = vpop.permute.xlu0 %1492
        %1496 = vrot.lane.b32.xlu0 %v1415, 32
        %v1497 = vpop.permute.xlu0 %1496
        %1500 = vrot.lane.b32.xlu0 %v1488, 48
        %v1501 = vpop.permute.xlu0 %1500
        %v1503 = vsel %vm816, %v1269, %v1493
        %v1504 = vsel %vm742, %v1503, %v1497
        %vm1505 = vcmask 392192
        %v1506 = vsel %vm1505, %v1504, %v1501
        %vm1507 = vcmask 523264
        %1508 = vst.msk [vmem:[%s512] sm:$0xff] %vm1507, %v1506
        %s1509 = sand.u32 %s264, 1
        %s1510 = scalar_lea.sflag [#allocation7], %s1509
        %s1511 = sand.u32 %s264, 1
        %s1512 = smul.addr %s1511, 8
        %s1513 = scalar_lea.vmem [#allocation16], %s1512
        %s1514 = sand.u32 %s292, 1
        %s1515 = scalar_lea.sflag [#allocation18], %s1514
        %s1516 = sand.u32 %s292, 1
        %s1517 = smul.addr %s1516, 32
        %s1518 = scalar_lea.vmem [#allocation17], %s1517
        // Predicated region
        $region85: #{tpu_custom_call.1} parent=55 // pred_check
          %p1519 = pneg %p274
        $region86: #{tpu_custom_call.1} parent=55 // pred_check_branch
          %1521 = sbr.rel (%p1519) target = $region88
        $region87: #{tpu_custom_call.1} parent=55 // pred_region
          %s1523 = ssub.s32 128, 128
          %1524 = vsyncadd %s1510, %s1523
          %s1525 = sadd.s32 %s41, %s40
          %s1526 = smul.addr %s1525, 128
          %s1527 = scalar_lea.hbm %s9, %s1526
          %s1529 = sshll.u32 %s1513, 4
          %s1530 = int_to_ptr.vmem [resolvable:$true] %s1529
          %1532 = dma.vmem_to_hbm [thread:$0]  %s1530, 128, %s1527, %s1510
        $region88: #{tpu_custom_call.1} parent=55 // pred_fallthru
          _
        // Predicated region
        $region89: #{tpu_custom_call.1} parent=55 // pred_check
          %p1533 = pneg %p302
        $region90: #{tpu_custom_call.1} parent=55 // pred_check_branch
          %1535 = sbr.rel (%p1533) target = $region92
        $region91: #{tpu_custom_call.1} parent=55 // pred_region
          %s1537 = ssub.s32 512, 512
          %1538 = vsyncadd %s1515, %s1537
          %s1539 = smul.addr %s40, 4
          %s1540 = sadd.s32 %s41, %s1539
          %s1541 = smul.addr %s1540, 128
          %s1542 = scalar_lea.hbm %s10, %s1541
          %s1543 = sshll.u32 %s1518, 4
          %s1544 = int_to_ptr.vmem [resolvable:$true] %s1543
          %1549 = dma.vmem_to_hbm [thread:$0]  %s1544, 512, %s1542, %s1515, 128, 128, 8
        $region92: #{tpu_custom_call.1} parent=55 // pred_fallthru
          _
      $region56: #{tpu_custom_call.1} parent=5 // pred_fallthru
        _
      %p1550 = scmp.le.s32.totalorder 2, %s31
      // Predicated region
      $region93: #{tpu_custom_call.1} parent=5 // pred_check
        %p1551 = pneg %p1550
      $region94: #{tpu_custom_call.1} parent=5 // pred_check_branch
        %1553 = sbr.rel (%p1551) target = $region96
      $region95: #{tpu_custom_call.1} parent=5 // pred_region
        %s1554 = ssub.s32 %s31, 2
        // Predicated region
        $region97: #{tpu_custom_call.1} parent=95 // pred_check
          %p1555 = pneg %p280
        $region98: #{tpu_custom_call.1} parent=95 // pred_check_branch
          %1557 = sbr.rel (%p1555) target = $region100
        $region99: #{tpu_custom_call.1} parent=95 // pred_region
          %s1558 = sand.u32 %s265, 1
          %s1559 = scalar_lea.sflag [#allocation7], %s1558
          %s1560 = sand.u32 %s265, 1
          %s1561 = smul.addr %s1560, 8
          %s1562 = scalar_lea.vmem [#allocation16], %s1561
          %1563 = dma.done %s1559, 128
        $region100: #{tpu_custom_call.1} parent=95 // pred_fallthru
          _
        // Predicated region
        $region101: #{tpu_custom_call.1} parent=95 // pred_check
          %p1564 = pneg %p308
        $region102: #{tpu_custom_call.1} parent=95 // pred_check_branch
          %1566 = sbr.rel (%p1564) target = $region104
        $region103: #{tpu_custom_call.1} parent=95 // pred_region
          %s1567 = sand.u32 %s293, 1
          %s1568 = scalar_lea.sflag [#allocation18], %s1567
          %s1569 = sand.u32 %s293, 1
          %s1570 = smul.addr %s1569, 32
          %s1571 = scalar_lea.vmem [#allocation17], %s1570
          %1572 = dma.done %s1568, 512
        $region104: #{tpu_custom_call.1} parent=95 // pred_fallthru
          _
      $region96: #{tpu_custom_call.1} parent=5 // pred_fallthru
        _
    $region6: #{tpu_custom_call.1} parent=1 // loop_footer
      %s35 = sadd.s32 1, %s31
    $region7: #{tpu_custom_call.1} parent=1 // loop_footer_branch
      %30 = sbr.rel target = $region3
    $region8: #{tpu_custom_call.1} parent=1 // loop_exit
      _
    %1573 = vsyncpa [#allocation6], 1
    %s1574 = scalar_lea.sflag [#allocation6], 1
    %1575 = vsyncpa %s1574, 1
    %1576 = vsyncpa [#allocation9], 1
    %s1577 = scalar_lea.sflag [#allocation9], 1
    %1578 = vsyncpa %s1577, 1
    %1579 = vsyncpa [#allocation12], 1
    %1580 = vsyncpa [#allocation15], 1
    %1581 = vsyncpa [#allocation7], 1
    %s1582 = scalar_lea.sflag [#allocation7], 1
    %1583 = vsyncpa %s1582, 1
    %1584 = vsyncpa [#allocation18], 1
    %s1585 = scalar_lea.sflag [#allocation18], 1
    %1586 = vsyncpa %s1585, 1

</llo_original>
